<compile_context>
chip_gen: v5e
topology: v5e:2x2
jax: 0.10.0
libtpu: 0.0.40
codegen_flags: <defaults>
</compile_context>

<pallas_src>
import functools

import jax
import jax.numpy as jnp
import numpy as np
from jax import lax
from jax.experimental import pallas as pl
from jax.experimental.pallas import tpu as pltpu


# ---------------------------------------------------------------------------
# Fused kernel: expand (1x1) -> depthwise 3x3 -> project (1x1) [+ residual]
# One batch element per grid step; hidden activation stays in VMEM scratch.
# ---------------------------------------------------------------------------
def _fused_kernel(W, HW, hidden, pad, expand, use_res, alpha1, alpha2, *refs):
    if expand:
        (x_ref, w_exp_ref, s1_ref, b1_ref,
         w_dw_ref, s2_ref, b2_ref,
         w_proj_ref, s3_ref, b3_ref,
         o_ref, hid_ref) = refs
    else:
        (x_ref,
         w_dw_ref, s2_ref, b2_ref,
         w_proj_ref, s3_ref, b3_ref,
         o_ref, hid_ref) = refs

    x = x_ref[...]                                          # (HW, Cin) bf16

    # ---- Stage 1: 1x1 expand conv (MXU, bf16 x bf16 -> f32) + BN + PReLU ----
    if expand:
        h = jnp.dot(x, w_exp_ref[...], preferred_element_type=jnp.float32)
        h = h * s1_ref[...] + b1_ref[...]                   # folded BN (eval)
        h = jnp.where(h >= 0.0, h, alpha1 * h)              # PReLU (shared alpha)
    else:
        h = x.astype(jnp.float32)

    # ---- Stage 2: 3x3 depthwise conv on the flattened (H*W, C) layout -------
    # Zero the scratch (halo rows become the zero padding), then store the
    # hidden slab at an 8-aligned sublane offset.  Each of the 9 taps is a
    # constant-offset read of HW rows; row over/underflow lands in the zero
    # pad, column wrap-around is killed by the per-column masks.
    hid_ref[...] = jnp.zeros_like(hid_ref)
    hid_ref[pl.ds(pad, HW), :] = h

    col = lax.broadcasted_iota(jnp.int32, (HW, hidden), 0) % W
    not_first_col = col > 0
    not_last_col = col < (W - 1)

    acc = jnp.zeros((HW, hidden), jnp.float32)
    for dh in range(3):
        for dw in range(3):
            start = pad + (dh - 1) * W + (dw - 1)
            patch = hid_ref[pl.ds(start, HW), :]
            if dw == 0:
                patch = jnp.where(not_first_col, patch, 0.0)
            elif dw == 2:
                patch = jnp.where(not_last_col, patch, 0.0)
            acc = acc + patch * w_dw_ref[pl.ds(3 * dh + dw, 1), :]
    acc = acc * s2_ref[...] + b2_ref[...]                   # folded BN (eval)
    acc = jnp.where(acc >= 0.0, acc, alpha2 * acc)          # PReLU

    # ---- Stage 3: 1x1 projection conv (MXU) + BN (+ residual) ---------------
    y = jnp.dot(acc.astype(jnp.bfloat16), w_proj_ref[...],
                preferred_element_type=jnp.float32)
    y = y * s3_ref[...] + b3_ref[...]                       # folded BN (eval)
    if use_res:
        y = y + x.astype(jnp.float32)
    o_ref[...] = y.astype(o_ref.dtype)


def _inverted_residual_fused(x_flat, params, *, W, out_planes, use_res):
    """x_flat: (N, H*W, Cin) bf16 (channels-last rows). Returns (N, H*W, Cout) f32."""
    n, HW, cin = x_flat.shape
    hidden = int(params["hidden"])
    expand = params["expand_ratio"] != 1
    pad = 8 * pl.cdiv(W + 1, 8)          # >= W+1 halo rows, 8-aligned store offset

    f32, bf16 = jnp.float32, jnp.bfloat16

    def wspec(shape):
        return pl.BlockSpec(shape, lambda i, _s=shape: (0,) * len(_s))

    inputs = [x_flat]
    in_specs = [pl.BlockSpec((None, HW, cin), lambda i: (i, 0, 0))]

    alpha1 = 0.0
    if expand:
        s1, b1 = params["bn1"]
        inputs += [params["w_expand"].astype(bf16),
                   s1.reshape(1, hidden).astype(f32),
                   b1.reshape(1, hidden).astype(f32)]
        in_specs += [wspec((cin, hidden)), wspec((1, hidden)), wspec((1, hidden))]
        alpha1 = float(params["alpha1"])

    s2, b2 = params["bn2"]
    s3, b3 = params["bn3"]
    inputs += [params["w_dw"].reshape(9, hidden).astype(f32),
               s2.reshape(1, hidden).astype(f32),
               b2.reshape(1, hidden).astype(f32),
               params["w_proj"].astype(bf16),
               s3.reshape(1, out_planes).astype(f32),
               b3.reshape(1, out_planes).astype(f32)]
    in_specs += [wspec((9, hidden)), wspec((1, hidden)), wspec((1, hidden)),
                 wspec((hidden, out_planes)),
                 wspec((1, out_planes)), wspec((1, out_planes))]

    kernel = functools.partial(_fused_kernel, W, HW, hidden, pad, expand,
                               use_res, alpha1, float(params["alpha2"]))

    return pl.pallas_call(
        kernel,
        grid=(n,),
        in_specs=in_specs,
        out_specs=pl.BlockSpec((None, HW, out_planes), lambda i: (i, 0, 0)),
        out_shape=jax.ShapeDtypeStruct((n, HW, out_planes), f32),
        scratch_shapes=[pltpu.VMEM((HW + 2 * pad, hidden), f32)],
        compiler_params=pltpu.CompilerParams(
            dimension_semantics=("parallel",)),   # v7x: shard batch over 2 TCs
    )(*inputs)


# ---------------------------------------------------------------------------
# Public forward (NCHW interface, matching the PyTorch module)
# ---------------------------------------------------------------------------
def inverted_residual_forward(params, x_nchw, stride, in_planes, out_planes):
    assert stride in (1, 2)
    n, c, h, w = x_nchw.shape
    assert c == in_planes
    use_res = (stride == 1) and (in_planes == out_planes)

    # NCHW -> flattened channels-last rows, bf16 HBM storage.
    x_flat = (jnp.transpose(x_nchw, (0, 2, 3, 1))
              .reshape(n, h * w, in_planes)
              .astype(jnp.bfloat16))

    out2d = _inverted_residual_fused(x_flat, params, W=w,
                                     out_planes=out_planes, use_res=use_res)
    out = out2d.reshape(n, h, w, out_planes)
    if stride == 2:
        # Exact: subsampling the dense same-padded depthwise conv == stride-2 conv.
        # TODO(synk): compute the strided output in-kernel (strided pl.ds reads of
        # the VMEM hidden slab) to avoid the 4x dense compute/writeback.
        out = out[:, ::stride, ::stride, :]
    return jnp.transpose(out, (0, 3, 1, 2))                 # NHWC -> NCHW


# ---------------------------------------------------------------------------
# Parameter init (deterministic, synthetic; BN folded to eval-mode scale/shift)
# ---------------------------------------------------------------------------
def init_params(key, in_planes, out_planes, expand_ratio):
    hidden = int(round(in_planes * expand_ratio))
    ks = jax.random.split(key, 16)

    def bn_affine(k1, k2, k3, k4, ch):
        gamma = jax.random.uniform(k1, (ch,), jnp.float32, 0.5, 1.5)
        beta = 0.1 * jax.random.normal(k2, (ch,), jnp.float32)
        mean = 0.1 * jax.random.normal(k3, (ch,), jnp.float32)
        var = jax.random.uniform(k4, (ch,), jnp.float32, 0.5, 1.5)
        scale = gamma / jnp.sqrt(var + 1e-5)
        return scale, beta - mean * scale

    p = {"hidden": hidden, "expand_ratio": expand_ratio}
    if expand_ratio != 1:
        p["w_expand"] = 0.1 * jax.random.normal(ks[0], (in_planes, hidden), jnp.float32)
        p["bn1"] = bn_affine(ks[1], ks[2], ks[3], ks[4], hidden)
        p["alpha1"] = 0.25          # nn.PReLU() default (single shared parameter)
    p["w_dw"] = 0.1 * jax.random.normal(ks[5], (3, 3, hidden), jnp.float32)
    p["bn2"] = bn_affine(ks[6], ks[7], ks[8], ks[9], hidden)
    p["alpha2"] = 0.25
    p["w_proj"] = 0.1 * jax.random.normal(ks[10], (hidden, out_planes), jnp.float32)
    p["bn3"] = bn_affine(ks[11], ks[12], ks[13], ks[14], out_planes)
    return p


# ---------------------------------------------------------------------------
# Pure-JAX reference for verification
# ---------------------------------------------------------------------------
def reference_forward(params, x_nchw, stride, in_planes, out_planes):
    x = jnp.transpose(x_nchw, (0, 2, 3, 1)).astype(jnp.float32)
    use_res = (stride == 1) and (in_planes == out_planes)
    hcur = x
    if params["expand_ratio"] != 1:
        hcur = jnp.einsum("nhwc,cd->nhwd", hcur, params["w_expand"],
                          precision=lax.Precision.HIGHEST)
        s, b = params["bn1"]
        hcur = hcur * s + b
        hcur = jnp.where(hcur >= 0, hcur, params["alpha1"] * hcur)
    c = params["hidden"]
    rhs = params["w_dw"].reshape(3, 3, 1, c)
    hcur = lax.conv_general_dilated(
        hcur, rhs, (stride, stride), ((1, 1), (1, 1)),
        dimension_numbers=("NHWC", "HWIO", "NHWC"),
        feature_group_count=c, precision=lax.Precision.HIGHEST)
    s, b = params["bn2"]
    hcur = hcur * s + b
    hcur = jnp.where(hcur >= 0, hcur, params["alpha2"] * hcur)
    hcur = jnp.einsum("nhwc,cd->nhwd", hcur, params["w_proj"],
                      precision=lax.Precision.HIGHEST)
    s, b = params["bn3"]
    hcur = hcur * s + b
    if use_res:
        hcur = hcur + x
    return jnp.transpose(hcur, (0, 3, 1, 2))


if __name__ == "__main__":
    key = jax.random.PRNGKey(0)
    kx, kp1, kp2, kp3 = jax.random.split(key, 4)

    N, Cin, H, W = 2, 8, 16, 16
    x = jax.random.normal(kx, (N, Cin, H, W), jnp.float32)

    # Case 1: stride=1, expand_ratio=4, residual path active.
    p1 = init_params(kp1, Cin, 8, 4)
    out1 = jax.block_until_ready(inverted_residual_forward(p1, x, 1, Cin, 8))
    ref1 = reference_forward(p1, x, 1, Cin, 8)
    assert out1.shape == (N, 8, H, W)
    np.testing.assert_allclose(np.asarray(out1), np.asarray(ref1), rtol=2e-2, atol=2e-2)

    # Case 2: stride=2, expand_ratio=4, no residual, channel change.
    p2 = init_params(kp2, Cin, 16, 4)
    out2 = jax.block_until_ready(inverted_residual_forward(p2, x, 2, Cin, 16))
    ref2 = reference_forward(p2, x, 2, Cin, 16)
    assert out2.shape == (N, 16, H // 2, W // 2)
    np.testing.assert_allclose(np.asarray(out2), np.asarray(ref2), rtol=2e-2, atol=2e-2)

    # Case 3: expand_ratio=1 (no expand conv), stride=1, residual.
    p3 = init_params(kp3, Cin, 8, 1)
    out3 = jax.block_until_ready(inverted_residual_forward(p3, x, 1, Cin, 8))
    ref3 = reference_forward(p3, x, 1, Cin, 8)
    np.testing.assert_allclose(np.asarray(out3), np.asarray(ref3), rtol=2e-2, atol=2e-2)

    print("KERNEL_OK")
</pallas_src>

<mosaic_0001>
module attributes {stable_mosaic.version = 11 : i64} {
  func.func @_fused_kernel(%arg0: i32, %arg1: memref<1x256x8xbf16, #tpu.memory_space<vmem>>, %arg2: memref<8x32xbf16, #tpu.memory_space<vmem>>, %arg3: memref<1x32xf32, #tpu.memory_space<vmem>>, %arg4: memref<1x32xf32, #tpu.memory_space<vmem>>, %arg5: memref<9x32xf32, #tpu.memory_space<vmem>>, %arg6: memref<1x32xf32, #tpu.memory_space<vmem>>, %arg7: memref<1x32xf32, #tpu.memory_space<vmem>>, %arg8: memref<32x8xbf16, #tpu.memory_space<vmem>>, %arg9: memref<1x8xf32, #tpu.memory_space<vmem>>, %arg10: memref<1x8xf32, #tpu.memory_space<vmem>>, %arg11: memref<1x256x8xf32, #tpu.memory_space<vmem>>, %arg12: memref<304x32xf32, #tpu.memory_space<vmem>>) attributes {dimension_semantics = [#tpu.dimension_semantics<parallel>], iteration_bounds = array<i64: 2>, scalar_prefetch = 0 : i64, scratch_operands = 1 : i64, tpu.core_type = #tpu.core_type<tc>, window_params = [{transform_indices = @transform_0, window_bounds = array<i64: 1, 256, 8>}, {pipeline_mode = #tpu.pipeline_mode<synchronous>, transform_indices = @transform_1, window_bounds = array<i64: 8, 32>}, {pipeline_mode = #tpu.pipeline_mode<synchronous>, transform_indices = @transform_2, window_bounds = array<i64: 1, 32>}, {pipeline_mode = #tpu.pipeline_mode<synchronous>, transform_indices = @transform_3, window_bounds = array<i64: 1, 32>}, {pipeline_mode = #tpu.pipeline_mode<synchronous>, transform_indices = @transform_4, window_bounds = array<i64: 9, 32>}, {pipeline_mode = #tpu.pipeline_mode<synchronous>, transform_indices = @transform_5, window_bounds = array<i64: 1, 32>}, {pipeline_mode = #tpu.pipeline_mode<synchronous>, transform_indices = @transform_6, window_bounds = array<i64: 1, 32>}, {pipeline_mode = #tpu.pipeline_mode<synchronous>, transform_indices = @transform_7, window_bounds = array<i64: 32, 8>}, {pipeline_mode = #tpu.pipeline_mode<synchronous>, transform_indices = @transform_8, window_bounds = array<i64: 1, 8>}, {pipeline_mode = #tpu.pipeline_mode<synchronous>, transform_indices = @transform_9, window_bounds = array<i64: 1, 8>}, {transform_indices = @transform_10, window_bounds = array<i64: 1, 256, 8>}]} {
    %c0 = arith.constant 0 : index
    %c0_0 = arith.constant 0 : index
    %c0_1 = arith.constant 0 : index
    %0 = vector.load %arg1[%c0, %c0_0, %c0_1] : memref<1x256x8xbf16, #tpu.memory_space<vmem>>, vector<1x256x8xbf16>
    %1 = vector.shape_cast %0 : vector<1x256x8xbf16> to vector<256x8xbf16>
    %c0_2 = arith.constant 0 : index
    %c0_3 = arith.constant 0 : index
    %2 = vector.load %arg2[%c0_2, %c0_3] : memref<8x32xbf16, #tpu.memory_space<vmem>>, vector<8x32xbf16>
    %cst = arith.constant dense<0.000000e+00> : vector<256x32xf32>
    %3 = tpu.matmul %1, %2, %cst {dimension_numbers = #tpu.dot_dimension_numbers<[1], [0], [0], [1], [0, 0, 1, 1], [], []>} : vector<256x8xbf16>, vector<8x32xbf16>, vector<256x32xf32> -> vector<256x32xf32>
    %c0_4 = arith.constant 0 : index
    %c0_5 = arith.constant 0 : index
    %4 = vector.load %arg3[%c0_4, %c0_5] : memref<1x32xf32, #tpu.memory_space<vmem>>, vector<1x32xf32>
    %5 = vector.broadcast %4 : vector<1x32xf32> to vector<256x32xf32>
    %6 = arith.mulf %3, %5 : vector<256x32xf32>
    %c0_6 = arith.constant 0 : index
    %c0_7 = arith.constant 0 : index
    %7 = vector.load %arg4[%c0_6, %c0_7] : memref<1x32xf32, #tpu.memory_space<vmem>>, vector<1x32xf32>
    %8 = vector.broadcast %7 : vector<1x32xf32> to vector<256x32xf32>
    %9 = arith.addf %6, %8 : vector<256x32xf32>
    %cst_8 = arith.constant 0.000000e+00 : f32
    %10 = vector.broadcast %cst_8 : f32 to vector<256x32xf32>
    %11 = arith.cmpf oge, %9, %10 : vector<256x32xf32>
    %cst_9 = arith.constant 2.500000e-01 : f32
    %12 = vector.broadcast %cst_9 : f32 to vector<256x32xf32>
    %13 = arith.mulf %12, %9 : vector<256x32xf32>
    %14 = arith.select %11, %9, %13 : vector<256x32xi1>, vector<256x32xf32>
    %cst_10 = arith.constant 0.000000e+00 : f32
    %15 = vector.broadcast %cst_10 : f32 to vector<304x32xf32>
    %c0_11 = arith.constant 0 : index
    %c0_12 = arith.constant 0 : index
    %16 = vector.load %arg12[%c0_11, %c0_12] : memref<304x32xf32, #tpu.memory_space<vmem>>, vector<304x32xf32>
    tpu.vector_store %arg12[%c0_11, %c0_12], %15 {strides = array<i32>} : memref<304x32xf32, #tpu.memory_space<vmem>>, vector<304x32xf32>,
    %c24 = arith.constant 24 : index
    %c0_13 = arith.constant 0 : index
    %17 = vector.load %arg12[%c24, %c0_13] : memref<304x32xf32, #tpu.memory_space<vmem>>, vector<256x32xf32>
    tpu.vector_store %arg12[%c24, %c0_13], %14 {strides = array<i32>} : memref<304x32xf32, #tpu.memory_space<vmem>>, vector<256x32xf32>,
    %18 = tpu.iota {dimensions = array<i32: 0>} : vector<256x32xi32>
    %c16_i32 = arith.constant 16 : i32
    %c0_i32 = arith.constant 0 : i32
    %19 = arith.cmpi eq, %c16_i32, %c0_i32 : i32
    %c1_i32 = arith.constant 1 : i32
    %20 = arith.select %19, %c1_i32, %c16_i32 : i32
    %21 = vector.broadcast %20 : i32 to vector<256x32xi32>
    %22 = arith.remsi %18, %21 : vector<256x32xi32>
    %c0_i32_14 = arith.constant 0 : i32
    %23 = vector.broadcast %c0_i32_14 : i32 to vector<256x32xi32>
    %24 = arith.cmpi ne, %22, %23 : vector<256x32xi32>
    %c0_i32_15 = arith.constant 0 : i32
    %25 = vector.broadcast %c0_i32_15 : i32 to vector<256x32xi32>
    %26 = arith.cmpi slt, %22, %25 : vector<256x32xi32>
    %c0_i32_16 = arith.constant 0 : i32
    %27 = arith.cmpi slt, %20, %c0_i32_16 : i32
    %28 = vector.broadcast %27 : i1 to vector<256x32xi1>
    %29 = vector.broadcast %28 : vector<256x32xi1> to vector<256x32xi1>
    %30 = arith.xori %26, %29 : vector<256x32xi1>
    %31 = arith.andi %30, %24 : vector<256x32xi1>
    %32 = vector.broadcast %20 : i32 to vector<256x32xi32>
    %33 = arith.addi %22, %32 : vector<256x32xi32>
    %34 = arith.select %31, %33, %22 : vector<256x32xi1>, vector<256x32xi32>
    %c0_i32_17 = arith.constant 0 : i32
    %35 = vector.broadcast %c0_i32_17 : i32 to vector<256x32xi32>
    %36 = arith.cmpi sgt, %34, %35 : vector<256x32xi32>
    %c15_i32 = arith.constant 15 : i32
    %37 = vector.broadcast %c15_i32 : i32 to vector<256x32xi32>
    %38 = arith.cmpi slt, %34, %37 : vector<256x32xi32>
    %cst_18 = arith.constant 0.000000e+00 : f32
    %39 = vector.broadcast %cst_18 : f32 to vector<256x32xf32>
    %c7 = arith.constant 7 : index
    %c0_19 = arith.constant 0 : index
    %40 = vector.load %arg12[%c7, %c0_19] : memref<304x32xf32, #tpu.memory_space<vmem>>, vector<256x32xf32>
    %cst_20 = arith.constant 0.000000e+00 : f32
    %41 = vector.broadcast %cst_20 : f32 to vector<256x32xf32>
    %42 = arith.select %36, %40, %41 : vector<256x32xi1>, vector<256x32xf32>
    %c0_21 = arith.constant 0 : index
    %c0_22 = arith.constant 0 : index
    %43 = vector.load %arg5[%c0_21, %c0_22] : memref<9x32xf32, #tpu.memory_space<vmem>>, vector<1x32xf32>
    %44 = vector.broadcast %43 : vector<1x32xf32> to vector<256x32xf32>
    %45 = arith.mulf %42, %44 : vector<256x32xf32>
    %46 = arith.addf %39, %45 : vector<256x32xf32>
    %c8 = arith.constant 8 : index
    %c0_23 = arith.constant 0 : index
    %47 = vector.load %arg12[%c8, %c0_23] : memref<304x32xf32, #tpu.memory_space<vmem>>, vector<256x32xf32>
    %c1 = arith.constant 1 : index
    %c0_24 = arith.constant 0 : index
    %48 = vector.load %arg5[%c1, %c0_24] : memref<9x32xf32, #tpu.memory_space<vmem>>, vector<1x32xf32>
    %49 = vector.broadcast %48 : vector<1x32xf32> to vector<256x32xf32>
    %50 = arith.mulf %47, %49 : vector<256x32xf32>
    %51 = arith.addf %46, %50 : vector<256x32xf32>
    %c9 = arith.constant 9 : index
    %c0_25 = arith.constant 0 : index
    %52 = vector.load %arg12[%c9, %c0_25] : memref<304x32xf32, #tpu.memory_space<vmem>>, vector<256x32xf32>
    %cst_26 = arith.constant 0.000000e+00 : f32
    %53 = vector.broadcast %cst_26 : f32 to vector<256x32xf32>
    %54 = arith.select %38, %52, %53 : vector<256x32xi1>, vector<256x32xf32>
    %c2 = arith.constant 2 : index
    %c0_27 = arith.constant 0 : index
    %55 = vector.load %arg5[%c2, %c0_27] : memref<9x32xf32, #tpu.memory_space<vmem>>, vector<1x32xf32>
    %56 = vector.broadcast %55 : vector<1x32xf32> to vector<256x32xf32>
    %57 = arith.mulf %54, %56 : vector<256x32xf32>
    %58 = arith.addf %51, %57 : vector<256x32xf32>
    %c23 = arith.constant 23 : index
    %c0_28 = arith.constant 0 : index
    %59 = vector.load %arg12[%c23, %c0_28] : memref<304x32xf32, #tpu.memory_space<vmem>>, vector<256x32xf32>
    %cst_29 = arith.constant 0.000000e+00 : f32
    %60 = vector.broadcast %cst_29 : f32 to vector<256x32xf32>
    %61 = arith.select %36, %59, %60 : vector<256x32xi1>, vector<256x32xf32>
    %c3 = arith.constant 3 : index
    %c0_30 = arith.constant 0 : index
    %62 = vector.load %arg5[%c3, %c0_30] : memref<9x32xf32, #tpu.memory_space<vmem>>, vector<1x32xf32>
    %63 = vector.broadcast %62 : vector<1x32xf32> to vector<256x32xf32>
    %64 = arith.mulf %61, %63 : vector<256x32xf32>
    %65 = arith.addf %58, %64 : vector<256x32xf32>
    %c24_31 = arith.constant 24 : index
    %c0_32 = arith.constant 0 : index
    %66 = vector.load %arg12[%c24_31, %c0_32] : memref<304x32xf32, #tpu.memory_space<vmem>>, vector<256x32xf32>
    %c4 = arith.constant 4 : index
    %c0_33 = arith.constant 0 : index
    %67 = vector.load %arg5[%c4, %c0_33] : memref<9x32xf32, #tpu.memory_space<vmem>>, vector<1x32xf32>
    %68 = vector.broadcast %67 : vector<1x32xf32> to vector<256x32xf32>
    %69 = arith.mulf %66, %68 : vector<256x32xf32>
    %70 = arith.addf %65, %69 : vector<256x32xf32>
    %c25 = arith.constant 25 : index
    %c0_34 = arith.constant 0 : index
    %71 = vector.load %arg12[%c25, %c0_34] : memref<304x32xf32, #tpu.memory_space<vmem>>, vector<256x32xf32>
    %cst_35 = arith.constant 0.000000e+00 : f32
    %72 = vector.broadcast %cst_35 : f32 to vector<256x32xf32>
    %73 = arith.select %38, %71, %72 : vector<256x32xi1>, vector<256x32xf32>
    %c5 = arith.constant 5 : index
    %c0_36 = arith.constant 0 : index
    %74 = vector.load %arg5[%c5, %c0_36] : memref<9x32xf32, #tpu.memory_space<vmem>>, vector<1x32xf32>
    %75 = vector.broadcast %74 : vector<1x32xf32> to vector<256x32xf32>
    %76 = arith.mulf %73, %75 : vector<256x32xf32>
    %77 = arith.addf %70, %76 : vector<256x32xf32>
    %c39 = arith.constant 39 : index
    %c0_37 = arith.constant 0 : index
    %78 = vector.load %arg12[%c39, %c0_37] : memref<304x32xf32, #tpu.memory_space<vmem>>, vector<256x32xf32>
    %cst_38 = arith.constant 0.000000e+00 : f32
    %79 = vector.broadcast %cst_38 : f32 to vector<256x32xf32>
    %80 = arith.select %36, %78, %79 : vector<256x32xi1>, vector<256x32xf32>
    %c6 = arith.constant 6 : index
    %c0_39 = arith.constant 0 : index
    %81 = vector.load %arg5[%c6, %c0_39] : memref<9x32xf32, #tpu.memory_space<vmem>>, vector<1x32xf32>
    %82 = vector.broadcast %81 : vector<1x32xf32> to vector<256x32xf32>
    %83 = arith.mulf %80, %82 : vector<256x32xf32>
    %84 = arith.addf %77, %83 : vector<256x32xf32>
    %c40 = arith.constant 40 : index
    %c0_40 = arith.constant 0 : index
    %85 = vector.load %arg12[%c40, %c0_40] : memref<304x32xf32, #tpu.memory_space<vmem>>, vector<256x32xf32>
    %c7_41 = arith.constant 7 : index
    %c0_42 = arith.constant 0 : index
    %86 = vector.load %arg5[%c7_41, %c0_42] : memref<9x32xf32, #tpu.memory_space<vmem>>, vector<1x32xf32>
    %87 = vector.broadcast %86 : vector<1x32xf32> to vector<256x32xf32>
    %88 = arith.mulf %85, %87 : vector<256x32xf32>
    %89 = arith.addf %84, %88 : vector<256x32xf32>
    %c41 = arith.constant 41 : index
    %c0_43 = arith.constant 0 : index
    %90 = vector.load %arg12[%c41, %c0_43] : memref<304x32xf32, #tpu.memory_space<vmem>>, vector<256x32xf32>
    %cst_44 = arith.constant 0.000000e+00 : f32
    %91 = vector.broadcast %cst_44 : f32 to vector<256x32xf32>
    %92 = arith.select %38, %90, %91 : vector<256x32xi1>, vector<256x32xf32>
    %c8_45 = arith.constant 8 : index
    %c0_46 = arith.constant 0 : index
    %93 = vector.load %arg5[%c8_45, %c0_46] : memref<9x32xf32, #tpu.memory_space<vmem>>, vector<1x32xf32>
    %94 = vector.broadcast %93 : vector<1x32xf32> to vector<256x32xf32>
    %95 = arith.mulf %92, %94 : vector<256x32xf32>
    %96 = arith.addf %89, %95 : vector<256x32xf32>
    %c0_47 = arith.constant 0 : index
    %c0_48 = arith.constant 0 : index
    %97 = vector.load %arg6[%c0_47, %c0_48] : memref<1x32xf32, #tpu.memory_space<vmem>>, vector<1x32xf32>
    %98 = vector.broadcast %97 : vector<1x32xf32> to vector<256x32xf32>
    %99 = arith.mulf %96, %98 : vector<256x32xf32>
    %c0_49 = arith.constant 0 : index
    %c0_50 = arith.constant 0 : index
    %100 = vector.load %arg7[%c0_49, %c0_50] : memref<1x32xf32, #tpu.memory_space<vmem>>, vector<1x32xf32>
    %101 = vector.broadcast %100 : vector<1x32xf32> to vector<256x32xf32>
    %102 = arith.addf %99, %101 : vector<256x32xf32>
    %cst_51 = arith.constant 0.000000e+00 : f32
    %103 = vector.broadcast %cst_51 : f32 to vector<256x32xf32>
    %104 = arith.cmpf oge, %102, %103 : vector<256x32xf32>
    %cst_52 = arith.constant 2.500000e-01 : f32
    %105 = vector.broadcast %cst_52 : f32 to vector<256x32xf32>
    %106 = arith.mulf %105, %102 : vector<256x32xf32>
    %107 = arith.select %104, %102, %106 : vector<256x32xi1>, vector<256x32xf32>
    %108 = arith.truncf %107 : vector<256x32xf32> to vector<256x32xbf16>
    %c0_53 = arith.constant 0 : index
    %c0_54 = arith.constant 0 : index
    %109 = vector.load %arg8[%c0_53, %c0_54] : memref<32x8xbf16, #tpu.memory_space<vmem>>, vector<32x8xbf16>
    %cst_55 = arith.constant dense<0.000000e+00> : vector<256x8xf32>
    %110 = tpu.matmul %108, %109, %cst_55 {dimension_numbers = #tpu.dot_dimension_numbers<[1], [0], [0], [1], [0, 0, 1, 1], [], []>} : vector<256x32xbf16>, vector<32x8xbf16>, vector<256x8xf32> -> vector<256x8xf32>
    %c0_56 = arith.constant 0 : index
    %c0_57 = arith.constant 0 : index
    %111 = vector.load %arg9[%c0_56, %c0_57] : memref<1x8xf32, #tpu.memory_space<vmem>>, vector<1x8xf32>
    %112 = vector.broadcast %111 : vector<1x8xf32> to vector<256x8xf32>
    %113 = arith.mulf %110, %112 : vector<256x8xf32>
    %c0_58 = arith.constant 0 : index
    %c0_59 = arith.constant 0 : index
    %114 = vector.load %arg10[%c0_58, %c0_59] : memref<1x8xf32, #tpu.memory_space<vmem>>, vector<1x8xf32>
    %115 = vector.broadcast %114 : vector<1x8xf32> to vector<256x8xf32>
    %116 = arith.addf %113, %115 : vector<256x8xf32>
    %117 = arith.extf %1 : vector<256x8xbf16> to vector<256x8xf32>
    %118 = arith.addf %116, %117 : vector<256x8xf32>
    %c0_60 = arith.constant 0 : index
    %c0_61 = arith.constant 0 : index
    %c0_62 = arith.constant 0 : index
    %119 = vector.load %arg11[%c0_60, %c0_61, %c0_62] : memref<1x256x8xf32, #tpu.memory_space<vmem>>, vector<1x256x8xf32>
    %120 = vector.shape_cast %119 : vector<1x256x8xf32> to vector<256x8xf32>
    %121 = vector.shape_cast %118 : vector<256x8xf32> to vector<1x256x8xf32>
    tpu.vector_store %arg11[%c0_60, %c0_61, %c0_62], %121 {strides = array<i32>} : memref<1x256x8xf32, #tpu.memory_space<vmem>>, vector<1x256x8xf32>,
    return
  }
  func.func @transform_0(%arg0: i32) -> (i32, i32, i32) {
    %c0_i32 = arith.constant 0 : i32
    %c0_i32_0 = arith.constant 0 : i32
    %c0_i32_1 = arith.constant 0 : i32
    return %arg0, %c0_i32, %c0_i32_0 : i32, i32, i32
  }
  func.func @transform_1(%arg0: i32) -> (i32, i32) {
    %c0_i32 = arith.constant 0 : i32
    %c0_i32_0 = arith.constant 0 : i32
    %c0_i32_1 = arith.constant 0 : i32
    return %c0_i32, %c0_i32_0 : i32, i32
  }
  func.func @transform_2(%arg0: i32) -> (i32, i32) {
    %c0_i32 = arith.constant 0 : i32
    %c0_i32_0 = arith.constant 0 : i32
    %c0_i32_1 = arith.constant 0 : i32
    return %c0_i32, %c0_i32_0 : i32, i32
  }
  func.func @transform_3(%arg0: i32) -> (i32, i32) {
    %c0_i32 = arith.constant 0 : i32
    %c0_i32_0 = arith.constant 0 : i32
    %c0_i32_1 = arith.constant 0 : i32
    return %c0_i32, %c0_i32_0 : i32, i32
  }
  func.func @transform_4(%arg0: i32) -> (i32, i32) {
    %c0_i32 = arith.constant 0 : i32
    %c0_i32_0 = arith.constant 0 : i32
    %c0_i32_1 = arith.constant 0 : i32
    return %c0_i32, %c0_i32_0 : i32, i32
  }
  func.func @transform_5(%arg0: i32) -> (i32, i32) {
    %c0_i32 = arith.constant 0 : i32
    %c0_i32_0 = arith.constant 0 : i32
    %c0_i32_1 = arith.constant 0 : i32
    return %c0_i32, %c0_i32_0 : i32, i32
  }
  func.func @transform_6(%arg0: i32) -> (i32, i32) {
    %c0_i32 = arith.constant 0 : i32
    %c0_i32_0 = arith.constant 0 : i32
    %c0_i32_1 = arith.constant 0 : i32
    return %c0_i32, %c0_i32_0 : i32, i32
  }
  func.func @transform_7(%arg0: i32) -> (i32, i32) {
    %c0_i32 = arith.constant 0 : i32
    %c0_i32_0 = arith.constant 0 : i32
    %c0_i32_1 = arith.constant 0 : i32
    return %c0_i32, %c0_i32_0 : i32, i32
  }
  func.func @transform_8(%arg0: i32) -> (i32, i32) {
    %c0_i32 = arith.constant 0 : i32
    %c0_i32_0 = arith.constant 0 : i32
    %c0_i32_1 = arith.constant 0 : i32
    return %c0_i32, %c0_i32_0 : i32, i32
  }
  func.func @transform_9(%arg0: i32) -> (i32, i32) {
    %c0_i32 = arith.constant 0 : i32
    %c0_i32_0 = arith.constant 0 : i32
    %c0_i32_1 = arith.constant 0 : i32
    return %c0_i32, %c0_i32_0 : i32, i32
  }
  func.func @transform_10(%arg0: i32) -> (i32, i32, i32) {
    %c0_i32 = arith.constant 0 : i32
    %c0_i32_0 = arith.constant 0 : i32
    %c0_i32_1 = arith.constant 0 : i32
    return %arg0, %c0_i32, %c0_i32_0 : i32, i32, i32
  }
}

</mosaic_0001>

<llo_original>
// kernel: tpu_custom_call.1
$region0: #{tpu_custom_call.1}
  #allocation0 [shape = 'u32[]', space=smem, size = 0x4, offset = 0x4, fixed_abs, tag = 'smem constant byte address 0x4 - core index']
  #allocation1 [shape = 'u32[72,128]{1,0:T(1,128)}', space=vmem, size = 0x9000, scoped, tag = 'internal scratch']
  #allocation2 [shape = 'f32[304,32]{1,0:T(8,128)}', space=vmem, size = 0x26000, scoped, tag = 'scratch operand']
  %s0 = inlined_call_operand.vmem [shape: bf16[2,256,8], index: 0, kind: input, shape index: {}]
  %s1 = inlined_call_operand.vmem [shape: bf16[8,32], index: 1, kind: input, shape index: {}]
  %s2 = inlined_call_operand.vmem [shape: f32[1,32], index: 2, kind: input, shape index: {}]
  %s3 = inlined_call_operand.vmem [shape: f32[1,32], index: 3, kind: input, shape index: {}]
  %s4 = inlined_call_operand.vmem [shape: f32[9,32], index: 4, kind: input, shape index: {}]
  %s5 = inlined_call_operand.vmem [shape: f32[1,32], index: 5, kind: input, shape index: {}]
  %s6 = inlined_call_operand.vmem [shape: f32[1,32], index: 6, kind: input, shape index: {}]
  %s7 = inlined_call_operand.vmem [shape: bf16[32,8], index: 7, kind: input, shape index: {}]
  %s8 = inlined_call_operand.vmem [shape: f32[1,8], index: 8, kind: input, shape index: {}]
  %s9 = inlined_call_operand.vmem [shape: f32[1,8], index: 9, kind: input, shape index: {}]
  %s10 = inlined_call_operand.vmem [shape: f32[2,256,8], index: 10, kind: output, shape index: {}]
  %s11 = sld [smem:[#allocation0]]
  $region73: #{tpu_custom_call.1} parent=0
    _
  %s13 = ssub.s32 1, %s11
  %s14 = scalar_select 0, %s13, %s11
  loop: start=0, step=1, limit=4
  $region2: #{tpu_custom_call.1} parent=0 // loop_pre_header
    _
  $region3: #{tpu_custom_call.1} parent=0 // loop_header
    %s16 = sphi 0, %s20
    %p17 = scmp.ge.s32.totalorder %s16, 4
    %s26 = sphi 0, %s28
    %s29 = sphi 0, %s26
    %s30 = sphi 0, %s29
    %s46 = sphi 0, %s30
    %s50 = sphi 0, %s50
    %s52 = sphi 0, %s50
    %s53 = sphi 0, %s52
    %s67 = sphi 0, %s53
    %s71 = sphi 0, %s71
    %s73 = sphi 0, %s71
    %s74 = sphi 0, %s73
    %s88 = sphi 0, %s74
    %s92 = sphi 0, %s92
    %s94 = sphi 0, %s92
    %s95 = sphi 0, %s94
    %s109 = sphi 0, %s95
    %s113 = sphi 0, %s113
    %s115 = sphi 0, %s113
    %s116 = sphi 0, %s115
    %s130 = sphi 0, %s116
    %s134 = sphi 0, %s134
    %s136 = sphi 0, %s134
    %s137 = sphi 0, %s136
    %s151 = sphi 0, %s137
    %s155 = sphi 0, %s155
    %s157 = sphi 0, %s155
    %s158 = sphi 0, %s157
    %s172 = sphi 0, %s158
    %s176 = sphi 0, %s176
    %s178 = sphi 0, %s176
    %s179 = sphi 0, %s178
    %s193 = sphi 0, %s179
    %s197 = sphi 0, %s197
    %s199 = sphi 0, %s197
    %s200 = sphi 0, %s199
    %s214 = sphi 0, %s200
    %s218 = sphi 0, %s218
    %s220 = sphi 0, %s218
    %s221 = sphi 0, %s220
    %s235 = sphi 0, %s221
    %s241 = sphi 0, %s243
    %s244 = sphi 0, %s241
    %s245 = sphi 0, %s244
    %s261 = sphi 0, %s245
  $region4: #{tpu_custom_call.1} parent=0 // loop_header_branch
    %19 = sbr.rel (%p17) target = $region8
  $region5: #{tpu_custom_call.1} parent=0 // loop_body
    %s21 = ssub.s32 %s16, 1
    %s22 = ssub.s32 %s16, 2
    %s23 = sadd.s32 %s16, 1
    %s24 = ssub.s32 %s16, %s23
    %p25 = scmp.eq.s32.totalorder %s24, 0
    %s27 = sadd.s32 %s26, 1
    %s28 = scalar_select %p25, %s26, %s27
    %p31 = pneg %p25
    %p32 = scmp.eq.s32.totalorder %s16, 1
    %p33 = por %p31, %p32
    %p34 = scmp.ne.s32.totalorder %s26, %s29
    %p35 = scmp.eq.s32.totalorder %s16, 0
    %p36 = por %p34, %p35
    %p37 = scmp.ne.s32.totalorder %s26, %s29
    %p38 = scmp.eq.s32.totalorder %s21, 1
    %p39 = por %p37, %p38
    %p40 = scmp.ne.s32.totalorder %s29, %s30
    %p41 = scmp.eq.s32.totalorder %s21, 0
    %p42 = por %p40, %p41
    %p43 = scmp.ne.s32.totalorder %s29, %s30
    %p44 = scmp.eq.s32.totalorder %s22, 1
    %p45 = por %p43, %p44
    %p47 = scmp.ne.s32.totalorder %s30, %s46
    %p48 = scmp.eq.s32.totalorder %s22, 0
    %p49 = por %p47, %p48
    %s51 = sadd.s32 %s50, 1
    %p54 = scmp.eq.s32.totalorder %s16, 1
    %p55 = scmp.ne.s32.totalorder %s50, %s52
    %p56 = scmp.eq.s32.totalorder %s16, 0
    %p57 = por %p55, %p56
    %p58 = scmp.ne.s32.totalorder %s50, %s52
    %p59 = scmp.eq.s32.totalorder %s21, 1
    %p60 = por %p58, %p59
    %p61 = scmp.ne.s32.totalorder %s52, %s53
    %p62 = scmp.eq.s32.totalorder %s21, 0
    %p63 = por %p61, %p62
    %p64 = scmp.ne.s32.totalorder %s52, %s53
    %p65 = scmp.eq.s32.totalorder %s22, 1
    %p66 = por %p64, %p65
    %p68 = scmp.ne.s32.totalorder %s53, %s67
    %p69 = scmp.eq.s32.totalorder %s22, 0
    %p70 = por %p68, %p69
    %s72 = sadd.s32 %s71, 1
    %p75 = scmp.eq.s32.totalorder %s16, 1
    %p76 = scmp.ne.s32.totalorder %s71, %s73
    %p77 = scmp.eq.s32.totalorder %s16, 0
    %p78 = por %p76, %p77
    %p79 = scmp.ne.s32.totalorder %s71, %s73
    %p80 = scmp.eq.s32.totalorder %s21, 1
    %p81 = por %p79, %p80
    %p82 = scmp.ne.s32.totalorder %s73, %s74
    %p83 = scmp.eq.s32.totalorder %s21, 0
    %p84 = por %p82, %p83
    %p85 = scmp.ne.s32.totalorder %s73, %s74
    %p86 = scmp.eq.s32.totalorder %s22, 1
    %p87 = por %p85, %p86
    %p89 = scmp.ne.s32.totalorder %s74, %s88
    %p90 = scmp.eq.s32.totalorder %s22, 0
    %p91 = por %p89, %p90
    %s93 = sadd.s32 %s92, 1
    %p96 = scmp.eq.s32.totalorder %s16, 1
    %p97 = scmp.ne.s32.totalorder %s92, %s94
    %p98 = scmp.eq.s32.totalorder %s16, 0
    %p99 = por %p97, %p98
    %p100 = scmp.ne.s32.totalorder %s92, %s94
    %p101 = scmp.eq.s32.totalorder %s21, 1
    %p102 = por %p100, %p101
    %p103 = scmp.ne.s32.totalorder %s94, %s95
    %p104 = scmp.eq.s32.totalorder %s21, 0
    %p105 = por %p103, %p104
    %p106 = scmp.ne.s32.totalorder %s94, %s95
    %p107 = scmp.eq.s32.totalorder %s22, 1
    %p108 = por %p106, %p107
    %p110 = scmp.ne.s32.totalorder %s95, %s109
    %p111 = scmp.eq.s32.totalorder %s22, 0
    %p112 = por %p110, %p111
    %s114 = sadd.s32 %s113, 1
    %p117 = scmp.eq.s32.totalorder %s16, 1
    %p118 = scmp.ne.s32.totalorder %s113, %s115
    %p119 = scmp.eq.s32.totalorder %s16, 0
    %p120 = por %p118, %p119
    %p121 = scmp.ne.s32.totalorder %s113, %s115
    %p122 = scmp.eq.s32.totalorder %s21, 1
    %p123 = por %p121, %p122
    %p124 = scmp.ne.s32.totalorder %s115, %s116
    %p125 = scmp.eq.s32.totalorder %s21, 0
    %p126 = por %p124, %p125
    %p127 = scmp.ne.s32.totalorder %s115, %s116
    %p128 = scmp.eq.s32.totalorder %s22, 1
    %p129 = por %p127, %p128
    %p131 = scmp.ne.s32.totalorder %s116, %s130
    %p132 = scmp.eq.s32.totalorder %s22, 0
    %p133 = por %p131, %p132
    %s135 = sadd.s32 %s134, 1
    %p138 = scmp.eq.s32.totalorder %s16, 1
    %p139 = scmp.ne.s32.totalorder %s134, %s136
    %p140 = scmp.eq.s32.totalorder %s16, 0
    %p141 = por %p139, %p140
    %p142 = scmp.ne.s32.totalorder %s134, %s136
    %p143 = scmp.eq.s32.totalorder %s21, 1
    %p144 = por %p142, %p143
    %p145 = scmp.ne.s32.totalorder %s136, %s137
    %p146 = scmp.eq.s32.totalorder %s21, 0
    %p147 = por %p145, %p146
    %p148 = scmp.ne.s32.totalorder %s136, %s137
    %p149 = scmp.eq.s32.totalorder %s22, 1
    %p150 = por %p148, %p149
    %p152 = scmp.ne.s32.totalorder %s137, %s151
    %p153 = scmp.eq.s32.totalorder %s22, 0
    %p154 = por %p152, %p153
    %s156 = sadd.s32 %s155, 1
    %p159 = scmp.eq.s32.totalorder %s16, 1
    %p160 = scmp.ne.s32.totalorder %s155, %s157
    %p161 = scmp.eq.s32.totalorder %s16, 0
    %p162 = por %p160, %p161
    %p163 = scmp.ne.s32.totalorder %s155, %s157
    %p164 = scmp.eq.s32.totalorder %s21, 1
    %p165 = por %p163, %p164
    %p166 = scmp.ne.s32.totalorder %s157, %s158
    %p167 = scmp.eq.s32.totalorder %s21, 0
    %p168 = por %p166, %p167
    %p169 = scmp.ne.s32.totalorder %s157, %s158
    %p170 = scmp.eq.s32.totalorder %s22, 1
    %p171 = por %p169, %p170
    %p173 = scmp.ne.s32.totalorder %s158, %s172
    %p174 = scmp.eq.s32.totalorder %s22, 0
    %p175 = por %p173, %p174
    %s177 = sadd.s32 %s176, 1
    %p180 = scmp.eq.s32.totalorder %s16, 1
    %p181 = scmp.ne.s32.totalorder %s176, %s178
    %p182 = scmp.eq.s32.totalorder %s16, 0
    %p183 = por %p181, %p182
    %p184 = scmp.ne.s32.totalorder %s176, %s178
    %p185 = scmp.eq.s32.totalorder %s21, 1
    %p186 = por %p184, %p185
    %p187 = scmp.ne.s32.totalorder %s178, %s179
    %p188 = scmp.eq.s32.totalorder %s21, 0
    %p189 = por %p187, %p188
    %p190 = scmp.ne.s32.totalorder %s178, %s179
    %p191 = scmp.eq.s32.totalorder %s22, 1
    %p192 = por %p190, %p191
    %p194 = scmp.ne.s32.totalorder %s179, %s193
    %p195 = scmp.eq.s32.totalorder %s22, 0
    %p196 = por %p194, %p195
    %s198 = sadd.s32 %s197, 1
    %p201 = scmp.eq.s32.totalorder %s16, 1
    %p202 = scmp.ne.s32.totalorder %s197, %s199
    %p203 = scmp.eq.s32.totalorder %s16, 0
    %p204 = por %p202, %p203
    %p205 = scmp.ne.s32.totalorder %s197, %s199
    %p206 = scmp.eq.s32.totalorder %s21, 1
    %p207 = por %p205, %p206
    %p208 = scmp.ne.s32.totalorder %s199, %s200
    %p209 = scmp.eq.s32.totalorder %s21, 0
    %p210 = por %p208, %p209
    %p211 = scmp.ne.s32.totalorder %s199, %s200
    %p212 = scmp.eq.s32.totalorder %s22, 1
    %p213 = por %p211, %p212
    %p215 = scmp.ne.s32.totalorder %s200, %s214
    %p216 = scmp.eq.s32.totalorder %s22, 0
    %p217 = por %p215, %p216
    %s219 = sadd.s32 %s218, 1
    %p222 = scmp.eq.s32.totalorder %s16, 1
    %p223 = scmp.ne.s32.totalorder %s218, %s220
    %p224 = scmp.eq.s32.totalorder %s16, 0
    %p225 = por %p223, %p224
    %p226 = scmp.ne.s32.totalorder %s218, %s220
    %p227 = scmp.eq.s32.totalorder %s21, 1
    %p228 = por %p226, %p227
    %p229 = scmp.ne.s32.totalorder %s220, %s221
    %p230 = scmp.eq.s32.totalorder %s21, 0
    %p231 = por %p229, %p230
    %p232 = scmp.ne.s32.totalorder %s220, %s221
    %p233 = scmp.eq.s32.totalorder %s22, 1
    %p234 = por %p232, %p233
    %p236 = scmp.ne.s32.totalorder %s221, %s235
    %p237 = scmp.eq.s32.totalorder %s22, 0
    %p238 = por %p236, %p237
    %s239 = ssub.s32 %s16, %s23
    %p240 = scmp.eq.s32.totalorder %s239, 0
    %s242 = sadd.s32 %s241, 1
    %s243 = scalar_select %p240, %s241, %s242
    %p246 = pneg %p240
    %p247 = scmp.eq.s32.totalorder %s16, 1
    %p248 = por %p246, %p247
    %p249 = scmp.ne.s32.totalorder %s241, %s244
    %p250 = scmp.eq.s32.totalorder %s16, 0
    %p251 = por %p249, %p250
    %p252 = scmp.ne.s32.totalorder %s241, %s244
    %p253 = scmp.eq.s32.totalorder %s21, 1
    %p254 = por %p252, %p253
    %p255 = scmp.ne.s32.totalorder %s244, %s245
    %p256 = scmp.eq.s32.totalorder %s21, 0
    %p257 = por %p255, %p256
    %p258 = scmp.ne.s32.totalorder %s244, %s245
    %p259 = scmp.eq.s32.totalorder %s22, 1
    %p260 = por %p258, %p259
    %p262 = scmp.ne.s32.totalorder %s245, %s261
    %p263 = scmp.eq.s32.totalorder %s22, 0
    %p264 = por %p262, %p263
    %p265 = scmp.le.s32.totalorder 1, %s16
    %p266 = scmp.lt.s32.totalorder %s16, 3
    %p267 = pnand %p265, %p266
    %p268 = pneg %p267
    // Predicated region
    $region9: #{tpu_custom_call.1} parent=5 // pred_check
      _
    $region10: #{tpu_custom_call.1} parent=5 // pred_check_branch
      %270 = sbr.rel (%p267) target = $region12
    $region11: #{tpu_custom_call.1} parent=5 // pred_region
      %s271 = ssub.s32 %s16, 1
      // Predicated region
      $region13: #{tpu_custom_call.1} parent=11 // pred_check
        %p272 = pneg %p63
      $region14: #{tpu_custom_call.1} parent=11 // pred_check_branch
        %274 = sbr.rel (%p272) target = $region16
      $region15: #{tpu_custom_call.1} parent=11 // pred_region
        _
      $region16: #{tpu_custom_call.1} parent=11 // pred_fallthru
        _
      // Predicated region
      $region17: #{tpu_custom_call.1} parent=11 // pred_check
        %p275 = pneg %p84
      $region18: #{tpu_custom_call.1} parent=11 // pred_check_branch
        %277 = sbr.rel (%p275) target = $region20
      $region19: #{tpu_custom_call.1} parent=11 // pred_region
        _
      $region20: #{tpu_custom_call.1} parent=11 // pred_fallthru
        _
      // Predicated region
      $region21: #{tpu_custom_call.1} parent=11 // pred_check
        %p278 = pneg %p105
      $region22: #{tpu_custom_call.1} parent=11 // pred_check_branch
        %280 = sbr.rel (%p278) target = $region24
      $region23: #{tpu_custom_call.1} parent=11 // pred_region
        _
      $region24: #{tpu_custom_call.1} parent=11 // pred_fallthru
        _
      // Predicated region
      $region25: #{tpu_custom_call.1} parent=11 // pred_check
        %p281 = pneg %p126
      $region26: #{tpu_custom_call.1} parent=11 // pred_check_branch
        %283 = sbr.rel (%p281) target = $region28
      $region27: #{tpu_custom_call.1} parent=11 // pred_region
        _
      $region28: #{tpu_custom_call.1} parent=11 // pred_fallthru
        _
      // Predicated region
      $region29: #{tpu_custom_call.1} parent=11 // pred_check
        %p284 = pneg %p147
      $region30: #{tpu_custom_call.1} parent=11 // pred_check_branch
        %286 = sbr.rel (%p284) target = $region32
      $region31: #{tpu_custom_call.1} parent=11 // pred_region
        _
      $region32: #{tpu_custom_call.1} parent=11 // pred_fallthru
        _
      // Predicated region
      $region33: #{tpu_custom_call.1} parent=11 // pred_check
        %p287 = pneg %p168
      $region34: #{tpu_custom_call.1} parent=11 // pred_check_branch
        %289 = sbr.rel (%p287) target = $region36
      $region35: #{tpu_custom_call.1} parent=11 // pred_region
        _
      $region36: #{tpu_custom_call.1} parent=11 // pred_fallthru
        _
      // Predicated region
      $region37: #{tpu_custom_call.1} parent=11 // pred_check
        %p290 = pneg %p189
      $region38: #{tpu_custom_call.1} parent=11 // pred_check_branch
        %292 = sbr.rel (%p290) target = $region40
      $region39: #{tpu_custom_call.1} parent=11 // pred_region
        _
      $region40: #{tpu_custom_call.1} parent=11 // pred_fallthru
        _
      // Predicated region
      $region41: #{tpu_custom_call.1} parent=11 // pred_check
        %p293 = pneg %p210
      $region42: #{tpu_custom_call.1} parent=11 // pred_check_branch
        %295 = sbr.rel (%p293) target = $region44
      $region43: #{tpu_custom_call.1} parent=11 // pred_region
        _
      $region44: #{tpu_custom_call.1} parent=11 // pred_fallthru
        _
      // Predicated region
      $region45: #{tpu_custom_call.1} parent=11 // pred_check
        %p296 = pneg %p231
      $region46: #{tpu_custom_call.1} parent=11 // pred_check_branch
        %298 = sbr.rel (%p296) target = $region48
      $region47: #{tpu_custom_call.1} parent=11 // pred_region
        _
      $region48: #{tpu_custom_call.1} parent=11 // pred_fallthru
        _
    $region12: #{tpu_custom_call.1} parent=5 // pred_fallthru
      _
    %p299 = scmp.lt.s32.totalorder %s16, 2
    // Predicated region
    $region49: #{tpu_custom_call.1} parent=5 // pred_check
      %p300 = pneg %p299
    $region50: #{tpu_custom_call.1} parent=5 // pred_check_branch
      %302 = sbr.rel (%p300) target = $region52
    $region51: #{tpu_custom_call.1} parent=5 // pred_region
      // Predicated region
      $region53: #{tpu_custom_call.1} parent=51 // pred_check
        %p303 = pneg %p36
      $region54: #{tpu_custom_call.1} parent=51 // pred_check_branch
        %305 = sbr.rel (%p303) target = $region56
      $region55: #{tpu_custom_call.1} parent=51 // pred_region
        %p306 = scmp.lt.s32.totalorder %s16, 1
        %s307 = scalar_select %p306, %s16, 1
        %s308 = smul.addr %s307, 32
        %s309 = smul.addr %s308, 4
        %s310 = scalar_lea.vmem %s0, %s309
      $region56: #{tpu_custom_call.1} parent=51 // pred_fallthru
        _
    $region52: #{tpu_custom_call.1} parent=5 // pred_fallthru
      _
    %p311 = scmp.le.s32.totalorder 1, %s16
    %p312 = scmp.lt.s32.totalorder %s16, 3
    %p313 = pnand %p311, %p312
    %p314 = pneg %p313
    // Predicated region
    $region57: #{tpu_custom_call.1} parent=5 // pred_check
      _
    $region58: #{tpu_custom_call.1} parent=5 // pred_check_branch
      %316 = sbr.rel (%p313) target = $region60
    $region59: #{tpu_custom_call.1} parent=5 // pred_region
      %s317 = ssub.s32 %s16, 1
      %p318 = scmp.lt.s32.totalorder %s21, 1
      %s319 = scalar_select %p318, %s21, 1
      %s320 = smul.addr %s319, 32
      %s321 = smul.addr %s320, 4
      %s322 = scalar_lea.vmem %s0, %s321
      %p323 = pneg %p42
      %p324 = pneg %p39
      %p325 = pneg %p63
      %p326 = pneg %p60
      %p327 = pneg %p84
      %p328 = pneg %p81
      %p329 = pneg %p105
      %p330 = pneg %p102
      %p331 = pneg %p126
      %p332 = pneg %p123
      %p333 = pneg %p147
      %p334 = pneg %p144
      %p335 = pneg %p168
      %p336 = pneg %p165
      %p337 = pneg %p189
      %p338 = pneg %p186
      %p339 = pneg %p210
      %p340 = pneg %p207
      %p341 = pneg %p231
      %p342 = pneg %p228
      %p343 = pneg %p257
      %p344 = pneg %p254
      %p345 = scmp.lt.s32.totalorder %s21, 1
      %s346 = scalar_select %p345, %s21, 1
      %s347 = smul.addr %s346, 32
      %s348 = smul.addr %s347, 8
      %s349 = scalar_lea.vmem %s10, %s348
      %p350 = scmp.lt.s32.totalorder %s21, 1
      %s351 = scalar_select %p350, %s21, 1
      %s352 = smul.addr %s351, 32
      %s353 = smul.addr %s352, 4
      %s354 = scalar_lea.vmem %s0, %s353
      %p355 = scmp.lt.s32.totalorder %s21, 1
      %s356 = scalar_select %p355, %s21, 1
      %s357 = smul.addr %s356, 32
      %s358 = smul.addr %s357, 8
      %s359 = scalar_lea.vmem %s10, %s358
      %v361 = vld [vmem:[%s354] sm:$0xf]
      %v362 = vld [vmem:[%s354 + $0x4] sm:$0xf]
      %v363 = vld [vmem:[%s354 + $0x8] sm:$0xf]
      %v364 = vld [vmem:[%s354 + $0xc] sm:$0xf]
      %v365 = vld [vmem:[%s354 + $0x10] sm:$0xf]
      %v366 = vld [vmem:[%s354 + $0x14] sm:$0xf]
      %v367 = vld [vmem:[%s354 + $0x18] sm:$0xf]
      %v368 = vld [vmem:[%s354 + $0x1c] sm:$0xf]
      %v369 = vld [vmem:[%s354 + $0x20] sm:$0xf]
      %v370 = vld [vmem:[%s354 + $0x24] sm:$0xf]
      %v371 = vld [vmem:[%s354 + $0x28] sm:$0xf]
      %v372 = vld [vmem:[%s354 + $0x2c] sm:$0xf]
      %v373 = vld [vmem:[%s354 + $0x30] sm:$0xf]
      %v374 = vld [vmem:[%s354 + $0x34] sm:$0xf]
      %v375 = vld [vmem:[%s354 + $0x38] sm:$0xf]
      %v376 = vld [vmem:[%s354 + $0x3c] sm:$0xf]
      %v377 = vld [vmem:[%s354 + $0x40] sm:$0xf]
      %v378 = vld [vmem:[%s354 + $0x44] sm:$0xf]
      %v379 = vld [vmem:[%s354 + $0x48] sm:$0xf]
      %v380 = vld [vmem:[%s354 + $0x4c] sm:$0xf]
      %v381 = vld [vmem:[%s354 + $0x50] sm:$0xf]
      %v382 = vld [vmem:[%s354 + $0x54] sm:$0xf]
      %v383 = vld [vmem:[%s354 + $0x58] sm:$0xf]
      %v384 = vld [vmem:[%s354 + $0x5c] sm:$0xf]
      %v385 = vld [vmem:[%s354 + $0x60] sm:$0xf]
      %v386 = vld [vmem:[%s354 + $0x64] sm:$0xf]
      %v387 = vld [vmem:[%s354 + $0x68] sm:$0xf]
      %v388 = vld [vmem:[%s354 + $0x6c] sm:$0xf]
      %v389 = vld [vmem:[%s354 + $0x70] sm:$0xf]
      %v390 = vld [vmem:[%s354 + $0x74] sm:$0xf]
      %v391 = vld [vmem:[%s354 + $0x78] sm:$0xf]
      %v392 = vld [vmem:[%s354 + $0x7c] sm:$0xf]
      %v393 = vld [vmem:[%s1] sm:$0xf]
      %v426 = vunpack.c.l.b16 %v361
      %v427 = vunpack.c.l.b16 %v362
      %v428 = vunpack.c.l.b16 %v363
      %v429 = vunpack.c.l.b16 %v364
      %v430 = vunpack.c.l.b16 %v365
      %v431 = vunpack.c.l.b16 %v366
      %v432 = vunpack.c.l.b16 %v367
      %v433 = vunpack.c.l.b16 %v368
      %v434 = vunpack.c.l.b16 %v369
      %v435 = vunpack.c.l.b16 %v370
      %v436 = vunpack.c.l.b16 %v371
      %v437 = vunpack.c.l.b16 %v372
      %v438 = vunpack.c.l.b16 %v373
      %v439 = vunpack.c.l.b16 %v374
      %v440 = vunpack.c.l.b16 %v375
      %v441 = vunpack.c.l.b16 %v376
      %v442 = vunpack.c.l.b16 %v377
      %v443 = vunpack.c.l.b16 %v378
      %v444 = vunpack.c.l.b16 %v379
      %v445 = vunpack.c.l.b16 %v380
      %v446 = vunpack.c.l.b16 %v381
      %v447 = vunpack.c.l.b16 %v382
      %v448 = vunpack.c.l.b16 %v383
      %v449 = vunpack.c.l.b16 %v384
      %v450 = vunpack.c.l.b16 %v385
      %v451 = vunpack.c.l.b16 %v386
      %v452 = vunpack.c.l.b16 %v387
      %v453 = vunpack.c.l.b16 %v388
      %v454 = vunpack.c.l.b16 %v389
      %v455 = vunpack.c.l.b16 %v390
      %v456 = vunpack.c.l.b16 %v391
      %v457 = vunpack.c.l.b16 %v392
      %v458 = vpack.c.b16 %v427, %v426
      %v459 = vpack.c.b16 %v429, %v428
      %v460 = vpack.c.b16 %v431, %v430
      %v461 = vpack.c.b16 %v433, %v432
      %v462 = vpack.c.b16 %v435, %v434
      %v463 = vpack.c.b16 %v437, %v436
      %v464 = vpack.c.b16 %v439, %v438
      %v465 = vpack.c.b16 %v441, %v440
      %v466 = vpack.c.b16 %v443, %v442
      %v467 = vpack.c.b16 %v445, %v444
      %v468 = vpack.c.b16 %v447, %v446
      %v469 = vpack.c.b16 %v449, %v448
      %v470 = vpack.c.b16 %v451, %v450
      %v471 = vpack.c.b16 %v453, %v452
      %v472 = vpack.c.b16 %v455, %v454
      %v473 = vpack.c.b16 %v457, %v456
      %vm474 = vcmask 64512
      %v476 = vsel %vm474, %v458, 0
      %v479 = vsel %vm474, %v459, 0
      %v482 = vsel %vm474, %v460, 0
      %v485 = vsel %vm474, %v461, 0
      %v488 = vsel %vm474, %v462, 0
      %v491 = vsel %vm474, %v463, 0
      %v494 = vsel %vm474, %v464, 0
      %v497 = vsel %vm474, %v465, 0
      %v500 = vsel %vm474, %v466, 0
      %v503 = vsel %vm474, %v467, 0
      %v506 = vsel %vm474, %v468, 0
      %v509 = vsel %vm474, %v469, 0
      %v512 = vsel %vm474, %v470, 0
      %v515 = vsel %vm474, %v471, 0
      %v518 = vsel %vm474, %v472, 0
      %v521 = vsel %vm474, %v473, 0
      %vm523 = vcmask 1043456
      %v525 = vsel %vm523, %v393, 0
      %527 = vmatpush.bf16.msra.mxu0 0
      %528 = vmatpush.bf16.msra.mxu0 0
      %529 = vmatpush.bf16.msra.mxu0 0
      %530 = vmatpush.bf16.msra.mxu0 0
      %531 = vmatpush.bf16.msra.mxu0 0
      %532 = vmatpush.bf16.msra.mxu0 0
      %533 = vmatpush.bf16.msra.mxu0 0
      %534 = vmatpush.bf16.msra.mxu0 %v525
      %535 = vmatmul.bf16.gmra.mxu0 %v476
      %v536 = vpop.f32.mrf.mxu0
      %v537 = vadd.f32 0.0, %v536
      %v538 = vpop.f32.mrf.mxu0
      %v539 = vadd.f32 0.0, %v538
      %540 = vmatmul.bf16.gmra.mxu0 %v479
      %v541 = vpop.f32.mrf.mxu0
      %v542 = vadd.f32 0.0, %v541
      %v543 = vpop.f32.mrf.mxu0
      %v544 = vadd.f32 0.0, %v543
      %545 = vmatmul.bf16.gmra.mxu0 %v482
      %v546 = vpop.f32.mrf.mxu0
      %v547 = vadd.f32 0.0, %v546
      %v548 = vpop.f32.mrf.mxu0
      %v549 = vadd.f32 0.0, %v548
      %550 = vmatmul.bf16.gmra.mxu0 %v485
      %v551 = vpop.f32.mrf.mxu0
      %v552 = vadd.f32 0.0, %v551
      %v553 = vpop.f32.mrf.mxu0
      %v554 = vadd.f32 0.0, %v553
      %555 = vmatmul.bf16.gmra.mxu0 %v488
      %v556 = vpop.f32.mrf.mxu0
      %v557 = vadd.f32 0.0, %v556
      %v558 = vpop.f32.mrf.mxu0
      %v559 = vadd.f32 0.0, %v558
      %560 = vmatmul.bf16.gmra.mxu0 %v491
      %v561 = vpop.f32.mrf.mxu0
      %v562 = vadd.f32 0.0, %v561
      %v563 = vpop.f32.mrf.mxu0
      %v564 = vadd.f32 0.0, %v563
      %565 = vmatmul.bf16.gmra.mxu0 %v494
      %v566 = vpop.f32.mrf.mxu0
      %v567 = vadd.f32 0.0, %v566
      %v568 = vpop.f32.mrf.mxu0
      %v569 = vadd.f32 0.0, %v568
      %570 = vmatmul.bf16.gmra.mxu0 %v497
      %v571 = vpop.f32.mrf.mxu0
      %v572 = vadd.f32 0.0, %v571
      %v573 = vpop.f32.mrf.mxu0
      %v574 = vadd.f32 0.0, %v573
      %575 = vmatmul.bf16.gmra.mxu0 %v500
      %v576 = vpop.f32.mrf.mxu0
      %v577 = vadd.f32 0.0, %v576
      %v578 = vpop.f32.mrf.mxu0
      %v579 = vadd.f32 0.0, %v578
      %580 = vmatmul.bf16.gmra.mxu0 %v503
      %v581 = vpop.f32.mrf.mxu0
      %v582 = vadd.f32 0.0, %v581
      %v583 = vpop.f32.mrf.mxu0
      %v584 = vadd.f32 0.0, %v583
      %585 = vmatmul.bf16.gmra.mxu0 %v506
      %v586 = vpop.f32.mrf.mxu0
      %v587 = vadd.f32 0.0, %v586
      %v588 = vpop.f32.mrf.mxu0
      %v589 = vadd.f32 0.0, %v588
      %590 = vmatmul.bf16.gmra.mxu0 %v509
      %v591 = vpop.f32.mrf.mxu0
      %v592 = vadd.f32 0.0, %v591
      %v593 = vpop.f32.mrf.mxu0
      %v594 = vadd.f32 0.0, %v593
      %595 = vmatmul.bf16.gmra.mxu0 %v512
      %v596 = vpop.f32.mrf.mxu0
      %v597 = vadd.f32 0.0, %v596
      %v598 = vpop.f32.mrf.mxu0
      %v599 = vadd.f32 0.0, %v598
      %600 = vmatmul.bf16.gmra.mxu0 %v515
      %v601 = vpop.f32.mrf.mxu0
      %v602 = vadd.f32 0.0, %v601
      %v603 = vpop.f32.mrf.mxu0
      %v604 = vadd.f32 0.0, %v603
      %605 = vmatmul.bf16.gmra.mxu0 %v518
      %v606 = vpop.f32.mrf.mxu0
      %v607 = vadd.f32 0.0, %v606
      %v608 = vpop.f32.mrf.mxu0
      %v609 = vadd.f32 0.0, %v608
      %610 = vmatmul.bf16.gmra.mxu0 %v521
      %v611 = vpop.f32.mrf.mxu0
      %v612 = vadd.f32 0.0, %v611
      %v613 = vpop.f32.mrf.mxu0
      %v614 = vadd.f32 0.0, %v613
      %615 = vdwg.mxu0
      %v616 = vld [vmem:[%s2] sm:$0x1]
      %v618 = vperm.slane %v616, 0
      %v620 = vmul.f32 %v537, %v618
      %v621 = vmul.f32 %v539, %v618
      %v622 = vmul.f32 %v542, %v618
      %v623 = vmul.f32 %v544, %v618
      %v624 = vmul.f32 %v547, %v618
      %v625 = vmul.f32 %v549, %v618
      %v626 = vmul.f32 %v552, %v618
      %v627 = vmul.f32 %v554, %v618
      %v628 = vmul.f32 %v557, %v618
      %v629 = vmul.f32 %v559, %v618
      %v630 = vmul.f32 %v562, %v618
      %v631 = vmul.f32 %v564, %v618
      %v632 = vmul.f32 %v567, %v618
      %v633 = vmul.f32 %v569, %v618
      %v634 = vmul.f32 %v572, %v618
      %v635 = vmul.f32 %v574, %v618
      %v636 = vmul.f32 %v577, %v618
      %v637 = vmul.f32 %v579, %v618
      %v638 = vmul.f32 %v582, %v618
      %v639 = vmul.f32 %v584, %v618
      %v640 = vmul.f32 %v587, %v618
      %v641 = vmul.f32 %v589, %v618
      %v642 = vmul.f32 %v592, %v618
      %v643 = vmul.f32 %v594, %v618
      %v644 = vmul.f32 %v597, %v618
      %v645 = vmul.f32 %v599, %v618
      %v646 = vmul.f32 %v602, %v618
      %v647 = vmul.f32 %v604, %v618
      %v648 = vmul.f32 %v607, %v618
      %v649 = vmul.f32 %v609, %v618
      %v650 = vmul.f32 %v612, %v618
      %v651 = vmul.f32 %v614, %v618
      %v652 = vld [vmem:[%s3] sm:$0x1]
      %v654 = vperm.slane %v652, 0
      %v656 = vadd.f32 %v620, %v654
      %v657 = vadd.f32 %v621, %v654
      %v658 = vadd.f32 %v622, %v654
      %v659 = vadd.f32 %v623, %v654
      %v660 = vadd.f32 %v624, %v654
      %v661 = vadd.f32 %v625, %v654
      %v662 = vadd.f32 %v626, %v654
      %v663 = vadd.f32 %v627, %v654
      %v664 = vadd.f32 %v628, %v654
      %v665 = vadd.f32 %v629, %v654
      %v666 = vadd.f32 %v630, %v654
      %v667 = vadd.f32 %v631, %v654
      %v668 = vadd.f32 %v632, %v654
      %v669 = vadd.f32 %v633, %v654
      %v670 = vadd.f32 %v634, %v654
      %v671 = vadd.f32 %v635, %v654
      %v672 = vadd.f32 %v636, %v654
      %v673 = vadd.f32 %v637, %v654
      %v674 = vadd.f32 %v638, %v654
      %v675 = vadd.f32 %v639, %v654
      %v676 = vadd.f32 %v640, %v654
      %v677 = vadd.f32 %v641, %v654
      %v678 = vadd.f32 %v642, %v654
      %v679 = vadd.f32 %v643, %v654
      %v680 = vadd.f32 %v644, %v654
      %v681 = vadd.f32 %v645, %v654
      %v682 = vadd.f32 %v646, %v654
      %v683 = vadd.f32 %v647, %v654
      %v684 = vadd.f32 %v648, %v654
      %v685 = vadd.f32 %v649, %v654
      %v686 = vadd.f32 %v650, %v654
      %v687 = vadd.f32 %v651, %v654
      %vm688 = vcmp.ge.f32.partialorder %v656, 0.0
      %vm689 = vcmp.ge.f32.partialorder %v657, 0.0
      %vm690 = vcmp.ge.f32.partialorder %v658, 0.0
      %vm691 = vcmp.ge.f32.partialorder %v659, 0.0
      %vm692 = vcmp.ge.f32.partialorder %v660, 0.0
      %vm693 = vcmp.ge.f32.partialorder %v661, 0.0
      %vm694 = vcmp.ge.f32.partialorder %v662, 0.0
      %vm695 = vcmp.ge.f32.partialorder %v663, 0.0
      %vm696 = vcmp.ge.f32.partialorder %v664, 0.0
      %vm697 = vcmp.ge.f32.partialorder %v665, 0.0
      %vm698 = vcmp.ge.f32.partialorder %v666, 0.0
      %vm699 = vcmp.ge.f32.partialorder %v667, 0.0
      %vm700 = vcmp.ge.f32.partialorder %v668, 0.0
      %vm701 = vcmp.ge.f32.partialorder %v669, 0.0
      %vm702 = vcmp.ge.f32.partialorder %v670, 0.0
      %vm703 = vcmp.ge.f32.partialorder %v671, 0.0
      %vm704 = vcmp.ge.f32.partialorder %v672, 0.0
      %vm705 = vcmp.ge.f32.partialorder %v673, 0.0
      %vm706 = vcmp.ge.f32.partialorder %v674, 0.0
      %vm707 = vcmp.ge.f32.partialorder %v675, 0.0
      %vm708 = vcmp.ge.f32.partialorder %v676, 0.0
      %vm709 = vcmp.ge.f32.partialorder %v677, 0.0
      %vm710 = vcmp.ge.f32.partialorder %v678, 0.0
      %vm711 = vcmp.ge.f32.partialorder %v679, 0.0
      %vm712 = vcmp.ge.f32.partialorder %v680, 0.0
      %vm713 = vcmp.ge.f32.partialorder %v681, 0.0
      %vm714 = vcmp.ge.f32.partialorder %v682, 0.0
      %vm715 = vcmp.ge.f32.partialorder %v683, 0.0
      %vm716 = vcmp.ge.f32.partialorder %v684, 0.0
      %vm717 = vcmp.ge.f32.partialorder %v685, 0.0
      %vm718 = vcmp.ge.f32.partialorder %v686, 0.0
      %vm719 = vcmp.ge.f32.partialorder %v687, 0.0
      %v720 = vmul.f32 %v656, 0.25
      %v721 = vmul.f32 %v657, 0.25
      %v722 = vmul.f32 %v658, 0.25
      %v723 = vmul.f32 %v659, 0.25
      %v724 = vmul.f32 %v660, 0.25
      %v725 = vmul.f32 %v661, 0.25
      %v726 = vmul.f32 %v662, 0.25
      %v727 = vmul.f32 %v663, 0.25
      %v728 = vmul.f32 %v664, 0.25
      %v729 = vmul.f32 %v665, 0.25
      %v730 = vmul.f32 %v666, 0.25
      %v731 = vmul.f32 %v667, 0.25
      %v732 = vmul.f32 %v668, 0.25
      %v733 = vmul.f32 %v669, 0.25
      %v734 = vmul.f32 %v670, 0.25
      %v735 = vmul.f32 %v671, 0.25
      %v736 = vmul.f32 %v672, 0.25
      %v737 = vmul.f32 %v673, 0.25
      %v738 = vmul.f32 %v674, 0.25
      %v739 = vmul.f32 %v675, 0.25
      %v740 = vmul.f32 %v676, 0.25
      %v741 = vmul.f32 %v677, 0.25
      %v742 = vmul.f32 %v678, 0.25
      %v743 = vmul.f32 %v679, 0.25
      %v744 = vmul.f32 %v680, 0.25
      %v745 = vmul.f32 %v681, 0.25
      %v746 = vmul.f32 %v682, 0.25
      %v747 = vmul.f32 %v683, 0.25
      %v748 = vmul.f32 %v684, 0.25
      %v749 = vmul.f32 %v685, 0.25
      %v750 = vmul.f32 %v686, 0.25
      %v751 = vmul.f32 %v687, 0.25
      %v752 = vsel %vm688, %v656, %v720
      %v753 = vsel %vm689, %v657, %v721
      %v754 = vsel %vm690, %v658, %v722
      %v755 = vsel %vm691, %v659, %v723
      %v756 = vsel %vm692, %v660, %v724
      %v757 = vsel %vm693, %v661, %v725
      %v758 = vsel %vm694, %v662, %v726
      %v759 = vsel %vm695, %v663, %v727
      %v760 = vsel %vm696, %v664, %v728
      %v761 = vsel %vm697, %v665, %v729
      %v762 = vsel %vm698, %v666, %v730
      %v763 = vsel %vm699, %v667, %v731
      %v764 = vsel %vm700, %v668, %v732
      %v765 = vsel %vm701, %v669, %v733
      %v766 = vsel %vm702, %v670, %v734
      %v767 = vsel %vm703, %v671, %v735
      %v768 = vsel %vm704, %v672, %v736
      %v769 = vsel %vm705, %v673, %v737
      %v770 = vsel %vm706, %v674, %v738
      %v771 = vsel %vm707, %v675, %v739
      %v772 = vsel %vm708, %v676, %v740
      %v773 = vsel %vm709, %v677, %v741
      %v774 = vsel %vm710, %v678, %v742
      %v775 = vsel %vm711, %v679, %v743
      %v776 = vsel %vm712, %v680, %v744
      %v777 = vsel %vm713, %v681, %v745
      %v778 = vsel %vm714, %v682, %v746
      %v779 = vsel %vm715, %v683, %v747
      %v780 = vsel %vm716, %v684, %v748
      %v781 = vsel %vm717, %v685, %v749
      %v782 = vsel %vm718, %v686, %v750
      %v783 = vsel %vm719, %v687, %v751
      %vm784 = vcmask 261120
      %785 = vst.msk [vmem:[#allocation2] sm:$0xff] %vm784, 0.0
      %786 = vst.msk [vmem:[#allocation2 + $0x8] sm:$0xff] %vm784, 0.0
      %787 = vst.msk [vmem:[#allocation2 + $0x10] sm:$0xff] %vm784, 0.0
      %788 = vst.msk [vmem:[#allocation2 + $0x18] sm:$0xff] %vm784, 0.0
      %789 = vst.msk [vmem:[#allocation2 + $0x20] sm:$0xff] %vm784, 0.0
      %790 = vst.msk [vmem:[#allocation2 + $0x28] sm:$0xff] %vm784, 0.0
      %791 = vst.msk [vmem:[#allocation2 + $0x30] sm:$0xff] %vm784, 0.0
      %792 = vst.msk [vmem:[#allocation2 + $0x38] sm:$0xff] %vm784, 0.0
      %793 = vst.msk [vmem:[#allocation2 + $0x40] sm:$0xff] %vm784, 0.0
      %794 = vst.msk [vmem:[#allocation2 + $0x48] sm:$0xff] %vm784, 0.0
      %795 = vst.msk [vmem:[#allocation2 + $0x50] sm:$0xff] %vm784, 0.0
      %796 = vst.msk [vmem:[#allocation2 + $0x58] sm:$0xff] %vm784, 0.0
      %797 = vst.msk [vmem:[#allocation2 + $0x60] sm:$0xff] %vm784, 0.0
      %798 = vst.msk [vmem:[#allocation2 + $0x68] sm:$0xff] %vm784, 0.0
      %799 = vst.msk [vmem:[#allocation2 + $0x70] sm:$0xff] %vm784, 0.0
      %800 = vst.msk [vmem:[#allocation2 + $0x78] sm:$0xff] %vm784, 0.0
      %801 = vst.msk [vmem:[#allocation2 + $0x80] sm:$0xff] %vm784, 0.0
      %802 = vst.msk [vmem:[#allocation2 + $0x88] sm:$0xff] %vm784, 0.0
      %803 = vst.msk [vmem:[#allocation2 + $0x90] sm:$0xff] %vm784, 0.0
      %804 = vst.msk [vmem:[#allocation2 + $0x98] sm:$0xff] %vm784, 0.0
      %805 = vst.msk [vmem:[#allocation2 + $0xa0] sm:$0xff] %vm784, 0.0
      %806 = vst.msk [vmem:[#allocation2 + $0xa8] sm:$0xff] %vm784, 0.0
      %807 = vst.msk [vmem:[#allocation2 + $0xb0] sm:$0xff] %vm784, 0.0
      %808 = vst.msk [vmem:[#allocation2 + $0xb8] sm:$0xff] %vm784, 0.0
      %809 = vst.msk [vmem:[#allocation2 + $0xc0] sm:$0xff] %vm784, 0.0
      %810 = vst.msk [vmem:[#allocation2 + $0xc8] sm:$0xff] %vm784, 0.0
      %811 = vst.msk [vmem:[#allocation2 + $0xd0] sm:$0xff] %vm784, 0.0
      %812 = vst.msk [vmem:[#allocation2 + $0xd8] sm:$0xff] %vm784, 0.0
      %813 = vst.msk [vmem:[#allocation2 + $0xe0] sm:$0xff] %vm784, 0.0
      %814 = vst.msk [vmem:[#allocation2 + $0xe8] sm:$0xff] %vm784, 0.0
      %815 = vst.msk [vmem:[#allocation2 + $0xf0] sm:$0xff] %vm784, 0.0
      %816 = vst.msk [vmem:[#allocation2 + $0xf8] sm:$0xff] %vm784, 0.0
      %817 = vst.msk [vmem:[#allocation2 + $0x100] sm:$0xff] %vm784, 0.0
      %818 = vst.msk [vmem:[#allocation2 + $0x108] sm:$0xff] %vm784, 0.0
      %819 = vst.msk [vmem:[#allocation2 + $0x110] sm:$0xff] %vm784, 0.0
      %820 = vst.msk [vmem:[#allocation2 + $0x118] sm:$0xff] %vm784, 0.0
      %821 = vst.msk [vmem:[#allocation2 + $0x120] sm:$0xff] %vm784, 0.0
      %822 = vst.msk [vmem:[#allocation2 + $0x128] sm:$0xff] %vm784, 0.0
      %823 = vst.msk [vmem:[#allocation2 + $0x18] sm:$0xff] %vm784, %v752
      %824 = vst.msk [vmem:[#allocation2 + $0x20] sm:$0xff] %vm784, %v753
      %825 = vst.msk [vmem:[#allocation2 + $0x28] sm:$0xff] %vm784, %v754
      %826 = vst.msk [vmem:[#allocation2 + $0x30] sm:$0xff] %vm784, %v755
      %827 = vst.msk [vmem:[#allocation2 + $0x38] sm:$0xff] %vm784, %v756
      %828 = vst.msk [vmem:[#allocation2 + $0x40] sm:$0xff] %vm784, %v757
      %829 = vst.msk [vmem:[#allocation2 + $0x48] sm:$0xff] %vm784, %v758
      %830 = vst.msk [vmem:[#allocation2 + $0x50] sm:$0xff] %vm784, %v759
      %831 = vst.msk [vmem:[#allocation2 + $0x58] sm:$0xff] %vm784, %v760
      %832 = vst.msk [vmem:[#allocation2 + $0x60] sm:$0xff] %vm784, %v761
      %833 = vst.msk [vmem:[#allocation2 + $0x68] sm:$0xff] %vm784, %v762
      %834 = vst.msk [vmem:[#allocation2 + $0x70] sm:$0xff] %vm784, %v763
      %835 = vst.msk [vmem:[#allocation2 + $0x78] sm:$0xff] %vm784, %v764
      %836 = vst.msk [vmem:[#allocation2 + $0x80] sm:$0xff] %vm784, %v765
      %837 = vst.msk [vmem:[#allocation2 + $0x88] sm:$0xff] %vm784, %v766
      %838 = vst.msk [vmem:[#allocation2 + $0x90] sm:$0xff] %vm784, %v767
      %839 = vst.msk [vmem:[#allocation2 + $0x98] sm:$0xff] %vm784, %v768
      %840 = vst.msk [vmem:[#allocation2 + $0xa0] sm:$0xff] %vm784, %v769
      %841 = vst.msk [vmem:[#allocation2 + $0xa8] sm:$0xff] %vm784, %v770
      %842 = vst.msk [vmem:[#allocation2 + $0xb0] sm:$0xff] %vm784, %v771
      %843 = vst.msk [vmem:[#allocation2 + $0xb8] sm:$0xff] %vm784, %v772
      %844 = vst.msk [vmem:[#allocation2 + $0xc0] sm:$0xff] %vm784, %v773
      %845 = vst.msk [vmem:[#allocation2 + $0xc8] sm:$0xff] %vm784, %v774
      %846 = vst.msk [vmem:[#allocation2 + $0xd0] sm:$0xff] %vm784, %v775
      %847 = vst.msk [vmem:[#allocation2 + $0xd8] sm:$0xff] %vm784, %v776
      %848 = vst.msk [vmem:[#allocation2 + $0xe0] sm:$0xff] %vm784, %v777
      %849 = vst.msk [vmem:[#allocation2 + $0xe8] sm:$0xff] %vm784, %v778
      %850 = vst.msk [vmem:[#allocation2 + $0xf0] sm:$0xff] %vm784, %v779
      %851 = vst.msk [vmem:[#allocation2 + $0xf8] sm:$0xff] %vm784, %v780
      %852 = vst.msk [vmem:[#allocation2 + $0x100] sm:$0xff] %vm784, %v781
      %853 = vst.msk [vmem:[#allocation2 + $0x108] sm:$0xff] %vm784, %v782
      %854 = vst.msk [vmem:[#allocation2 + $0x110] sm:$0xff] %vm784, %v783
      %v855 = vlaneseq
      %v856 = vshrl.u32 %v855, 7
      %v857 = vadd.s32 %v856, 8
      %v858 = vadd.s32 %v856, 16
      %v859 = vadd.s32 %v856, 24
      %v860 = vadd.s32 %v856, 32
      %v861 = vadd.s32 %v856, 40
      %v862 = vadd.s32 %v856, 48
      %v863 = vadd.s32 %v856, 56
      %v864 = vadd.s32 %v856, 64
      %v865 = vadd.s32 %v856, 72
      %v866 = vadd.s32 %v856, 80
      %v867 = vadd.s32 %v856, 88
      %v868 = vadd.s32 %v856, 96
      %v869 = vadd.s32 %v856, 104
      %v870 = vadd.s32 %v856, 112
      %v871 = vadd.s32 %v856, 120
      %v872 = vadd.s32 %v856, 128
      %v873 = vadd.s32 %v856, 136
      %v874 = vadd.s32 %v856, 144
      %v875 = vadd.s32 %v856, 152
      %v876 = vadd.s32 %v856, 160
      %v877 = vadd.s32 %v856, 168
      %v878 = vadd.s32 %v856, 176
      %v879 = vadd.s32 %v856, 184
      %v880 = vadd.s32 %v856, 192
      %v881 = vadd.s32 %v856, 200
      %v882 = vadd.s32 %v856, 208
      %v883 = vadd.s32 %v856, 216
      %v884 = vadd.s32 %v856, 224
      %v885 = vadd.s32 %v856, 232
      %v886 = vadd.s32 %v856, 240
      %v887 = vadd.s32 %v856, 248
      %vm888 = vcmp.lt.s32.totalorder %v856, 0
      %v889 = vsub.s32 0, %v856
      %v890 = vsel %vm888, %v889, %v856
      %v891 = vshrl.u32 %v890, 4
      %v892 = vand.u32 %v890, 15
      %v893 = vsub.s32 0, %v892
      %v894 = vsel %vm888, %v893, %v892
      %vm895 = vcmp.lt.s32.totalorder %v857, 0
      %v896 = vsub.s32 0, %v857
      %v897 = vsel %vm895, %v896, %v857
      %v898 = vshrl.u32 %v897, 4
      %v899 = vand.u32 %v897, 15
      %v900 = vsub.s32 0, %v899
      %v901 = vsel %vm895, %v900, %v899
      %vm902 = vcmp.lt.s32.totalorder %v858, 0
      %v903 = vsub.s32 0, %v858
      %v904 = vsel %vm902, %v903, %v858
      %v905 = vshrl.u32 %v904, 4
      %v906 = vand.u32 %v904, 15
      %v907 = vsub.s32 0, %v906
      %v908 = vsel %vm902, %v907, %v906
      %vm909 = vcmp.lt.s32.totalorder %v859, 0
      %v910 = vsub.s32 0, %v859
      %v911 = vsel %vm909, %v910, %v859
      %v912 = vshrl.u32 %v911, 4
      %v913 = vand.u32 %v911, 15
      %v914 = vsub.s32 0, %v913
      %v915 = vsel %vm909, %v914, %v913
      %vm916 = vcmp.lt.s32.totalorder %v860, 0
      %v917 = vsub.s32 0, %v860
      %v918 = vsel %vm916, %v917, %v860
      %v919 = vshrl.u32 %v918, 4
      %v920 = vand.u32 %v918, 15
      %v921 = vsub.s32 0, %v920
      %v922 = vsel %vm916, %v921, %v920
      %vm923 = vcmp.lt.s32.totalorder %v861, 0
      %v924 = vsub.s32 0, %v861
      %v925 = vsel %vm923, %v924, %v861
      %v926 = vshrl.u32 %v925, 4
      %v927 = vand.u32 %v925, 15
      %v928 = vsub.s32 0, %v927
      %v929 = vsel %vm923, %v928, %v927
      %vm930 = vcmp.lt.s32.totalorder %v862, 0
      %v931 = vsub.s32 0, %v862
      %v932 = vsel %vm930, %v931, %v862
      %v933 = vshrl.u32 %v932, 4
      %v934 = vand.u32 %v932, 15
      %v935 = vsub.s32 0, %v934
      %v936 = vsel %vm930, %v935, %v934
      %vm937 = vcmp.lt.s32.totalorder %v863, 0
      %v938 = vsub.s32 0, %v863
      %v939 = vsel %vm937, %v938, %v863
      %v940 = vshrl.u32 %v939, 4
      %v941 = vand.u32 %v939, 15
      %v942 = vsub.s32 0, %v941
      %v943 = vsel %vm937, %v942, %v941
      %vm944 = vcmp.lt.s32.totalorder %v864, 0
      %v945 = vsub.s32 0, %v864
      %v946 = vsel %vm944, %v945, %v864
      %v947 = vshrl.u32 %v946, 4
      %v948 = vand.u32 %v946, 15
      %v949 = vsub.s32 0, %v948
      %v950 = vsel %vm944, %v949, %v948
      %vm951 = vcmp.lt.s32.totalorder %v865, 0
      %v952 = vsub.s32 0, %v865
      %v953 = vsel %vm951, %v952, %v865
      %v954 = vshrl.u32 %v953, 4
      %v955 = vand.u32 %v953, 15
      %v956 = vsub.s32 0, %v955
      %v957 = vsel %vm951, %v956, %v955
      %vm958 = vcmp.lt.s32.totalorder %v866, 0
      %v959 = vsub.s32 0, %v866
      %v960 = vsel %vm958, %v959, %v866
      %v961 = vshrl.u32 %v960, 4
      %v962 = vand.u32 %v960, 15
      %v963 = vsub.s32 0, %v962
      %v964 = vsel %vm958, %v963, %v962
      %vm965 = vcmp.lt.s32.totalorder %v867, 0
      %v966 = vsub.s32 0, %v867
      %v967 = vsel %vm965, %v966, %v867
      %v968 = vshrl.u32 %v967, 4
      %v969 = vand.u32 %v967, 15
      %v970 = vsub.s32 0, %v969
      %v971 = vsel %vm965, %v970, %v969
      %vm972 = vcmp.lt.s32.totalorder %v868, 0
      %v973 = vsub.s32 0, %v868
      %v974 = vsel %vm972, %v973, %v868
      %v975 = vshrl.u32 %v974, 4
      %v976 = vand.u32 %v974, 15
      %v977 = vsub.s32 0, %v976
      %v978 = vsel %vm972, %v977, %v976
      %vm979 = vcmp.lt.s32.totalorder %v869, 0
      %v980 = vsub.s32 0, %v869
      %v981 = vsel %vm979, %v980, %v869
      %v982 = vshrl.u32 %v981, 4
      %v983 = vand.u32 %v981, 15
      %v984 = vsub.s32 0, %v983
      %v985 = vsel %vm979, %v984, %v983
      %vm986 = vcmp.lt.s32.totalorder %v870, 0
      %v987 = vsub.s32 0, %v870
      %v988 = vsel %vm986, %v987, %v870
      %v989 = vshrl.u32 %v988, 4
      %v990 = vand.u32 %v988, 15
      %v991 = vsub.s32 0, %v990
      %v992 = vsel %vm986, %v991, %v990
      %vm993 = vcmp.lt.s32.totalorder %v871, 0
      %v994 = vsub.s32 0, %v871
      %v995 = vsel %vm993, %v994, %v871
      %v996 = vshrl.u32 %v995, 4
      %v997 = vand.u32 %v995, 15
      %v998 = vsub.s32 0, %v997
      %v999 = vsel %vm993, %v998, %v997
      %vm1000 = vcmp.lt.s32.totalorder %v872, 0
      %v1001 = vsub.s32 0, %v872
      %v1002 = vsel %vm1000, %v1001, %v872
      %v1003 = vshrl.u32 %v1002, 4
      %v1004 = vand.u32 %v1002, 15
      %v1005 = vsub.s32 0, %v1004
      %v1006 = vsel %vm1000, %v1005, %v1004
      %vm1007 = vcmp.lt.s32.totalorder %v873, 0
      %v1008 = vsub.s32 0, %v873
      %v1009 = vsel %vm1007, %v1008, %v873
      %v1010 = vshrl.u32 %v1009, 4
      %v1011 = vand.u32 %v1009, 15
      %v1012 = vsub.s32 0, %v1011
      %v1013 = vsel %vm1007, %v1012, %v1011
      %vm1014 = vcmp.lt.s32.totalorder %v874, 0
      %v1015 = vsub.s32 0, %v874
      %v1016 = vsel %vm1014, %v1015, %v874
      %v1017 = vshrl.u32 %v1016, 4
      %v1018 = vand.u32 %v1016, 15
      %v1019 = vsub.s32 0, %v1018
      %v1020 = vsel %vm1014, %v1019, %v1018
      %vm1021 = vcmp.lt.s32.totalorder %v875, 0
      %v1022 = vsub.s32 0, %v875
      %v1023 = vsel %vm1021, %v1022, %v875
      %v1024 = vshrl.u32 %v1023, 4
      %v1025 = vand.u32 %v1023, 15
      %v1026 = vsub.s32 0, %v1025
      %v1027 = vsel %vm1021, %v1026, %v1025
      %vm1028 = vcmp.lt.s32.totalorder %v876, 0
      %v1029 = vsub.s32 0, %v876
      %v1030 = vsel %vm1028, %v1029, %v876
      %v1031 = vshrl.u32 %v1030, 4
      %v1032 = vand.u32 %v1030, 15
      %v1033 = vsub.s32 0, %v1032
      %v1034 = vsel %vm1028, %v1033, %v1032
      %vm1035 = vcmp.lt.s32.totalorder %v877, 0
      %v1036 = vsub.s32 0, %v877
      %v1037 = vsel %vm1035, %v1036, %v877
      %v1038 = vshrl.u32 %v1037, 4
      %v1039 = vand.u32 %v1037, 15
      %v1040 = vsub.s32 0, %v1039
      %v1041 = vsel %vm1035, %v1040, %v1039
      %vm1042 = vcmp.lt.s32.totalorder %v878, 0
      %v1043 = vsub.s32 0, %v878
      %v1044 = vsel %vm1042, %v1043, %v878
      %v1045 = vshrl.u32 %v1044, 4
      %v1046 = vand.u32 %v1044, 15
      %v1047 = vsub.s32 0, %v1046
      %v1048 = vsel %vm1042, %v1047, %v1046
      %vm1049 = vcmp.lt.s32.totalorder %v879, 0
      %v1050 = vsub.s32 0, %v879
      %v1051 = vsel %vm1049, %v1050, %v879
      %v1052 = vshrl.u32 %v1051, 4
      %v1053 = vand.u32 %v1051, 15
      %v1054 = vsub.s32 0, %v1053
      %v1055 = vsel %vm1049, %v1054, %v1053
      %vm1056 = vcmp.lt.s32.totalorder %v880, 0
      %v1057 = vsub.s32 0, %v880
      %v1058 = vsel %vm1056, %v1057, %v880
      %v1059 = vshrl.u32 %v1058, 4
      %v1060 = vand.u32 %v1058, 15
      %v1061 = vsub.s32 0, %v1060
      %v1062 = vsel %vm1056, %v1061, %v1060
      %vm1063 = vcmp.lt.s32.totalorder %v881, 0
      %v1064 = vsub.s32 0, %v881
      %v1065 = vsel %vm1063, %v1064, %v881
      %v1066 = vshrl.u32 %v1065, 4
      %v1067 = vand.u32 %v1065, 15
      %v1068 = vsub.s32 0, %v1067
      %v1069 = vsel %vm1063, %v1068, %v1067
      %vm1070 = vcmp.lt.s32.totalorder %v882, 0
      %v1071 = vsub.s32 0, %v882
      %v1072 = vsel %vm1070, %v1071, %v882
      %v1073 = vshrl.u32 %v1072, 4
      %v1074 = vand.u32 %v1072, 15
      %v1075 = vsub.s32 0, %v1074
      %v1076 = vsel %vm1070, %v1075, %v1074
      %vm1077 = vcmp.lt.s32.totalorder %v883, 0
      %v1078 = vsub.s32 0, %v883
      %v1079 = vsel %vm1077, %v1078, %v883
      %v1080 = vshrl.u32 %v1079, 4
      %v1081 = vand.u32 %v1079, 15
      %v1082 = vsub.s32 0, %v1081
      %v1083 = vsel %vm1077, %v1082, %v1081
      %vm1084 = vcmp.lt.s32.totalorder %v884, 0
      %v1085 = vsub.s32 0, %v884
      %v1086 = vsel %vm1084, %v1085, %v884
      %v1087 = vshrl.u32 %v1086, 4
      %v1088 = vand.u32 %v1086, 15
      %v1089 = vsub.s32 0, %v1088
      %v1090 = vsel %vm1084, %v1089, %v1088
      %vm1091 = vcmp.lt.s32.totalorder %v885, 0
      %v1092 = vsub.s32 0, %v885
      %v1093 = vsel %vm1091, %v1092, %v885
      %v1094 = vshrl.u32 %v1093, 4
      %v1095 = vand.u32 %v1093, 15
      %v1096 = vsub.s32 0, %v1095
      %v1097 = vsel %vm1091, %v1096, %v1095
      %vm1098 = vcmp.lt.s32.totalorder %v886, 0
      %v1099 = vsub.s32 0, %v886
      %v1100 = vsel %vm1098, %v1099, %v886
      %v1101 = vshrl.u32 %v1100, 4
      %v1102 = vand.u32 %v1100, 15
      %v1103 = vsub.s32 0, %v1102
      %v1104 = vsel %vm1098, %v1103, %v1102
      %vm1105 = vcmp.lt.s32.totalorder %v887, 0
      %v1106 = vsub.s32 0, %v887
      %v1107 = vsel %vm1105, %v1106, %v887
      %v1108 = vshrl.u32 %v1107, 4
      %v1109 = vand.u32 %v1107, 15
      %v1110 = vsub.s32 0, %v1109
      %v1111 = vsel %vm1105, %v1110, %v1109
      %vm1112 = vcmp.ne.s32.totalorder %v894, 0
      %vm1113 = vcmp.ne.s32.totalorder %v901, 0
      %vm1114 = vcmp.ne.s32.totalorder %v908, 0
      %vm1115 = vcmp.ne.s32.totalorder %v915, 0
      %vm1116 = vcmp.ne.s32.totalorder %v922, 0
      %vm1117 = vcmp.ne.s32.totalorder %v929, 0
      %vm1118 = vcmp.ne.s32.totalorder %v936, 0
      %vm1119 = vcmp.ne.s32.totalorder %v943, 0
      %vm1120 = vcmp.ne.s32.totalorder %v950, 0
      %vm1121 = vcmp.ne.s32.totalorder %v957, 0
      %vm1122 = vcmp.ne.s32.totalorder %v964, 0
      %vm1123 = vcmp.ne.s32.totalorder %v971, 0
      %vm1124 = vcmp.ne.s32.totalorder %v978, 0
      %vm1125 = vcmp.ne.s32.totalorder %v985, 0
      %vm1126 = vcmp.ne.s32.totalorder %v992, 0
      %vm1127 = vcmp.ne.s32.totalorder %v999, 0
      %vm1128 = vcmp.ne.s32.totalorder %v1006, 0
      %vm1129 = vcmp.ne.s32.totalorder %v1013, 0
      %vm1130 = vcmp.ne.s32.totalorder %v1020, 0
      %vm1131 = vcmp.ne.s32.totalorder %v1027, 0
      %vm1132 = vcmp.ne.s32.totalorder %v1034, 0
      %vm1133 = vcmp.ne.s32.totalorder %v1041, 0
      %vm1134 = vcmp.ne.s32.totalorder %v1048, 0
      %vm1135 = vcmp.ne.s32.totalorder %v1055, 0
      %vm1136 = vcmp.ne.s32.totalorder %v1062, 0
      %vm1137 = vcmp.ne.s32.totalorder %v1069, 0
      %vm1138 = vcmp.ne.s32.totalorder %v1076, 0
      %vm1139 = vcmp.ne.s32.totalorder %v1083, 0
      %vm1140 = vcmp.ne.s32.totalorder %v1090, 0
      %vm1141 = vcmp.ne.s32.totalorder %v1097, 0
      %vm1142 = vcmp.ne.s32.totalorder %v1104, 0
      %vm1143 = vcmp.ne.s32.totalorder %v1111, 0
      %vm1144 = vcmp.lt.s32.totalorder %v894, 0
      %vm1145 = vcmp.lt.s32.totalorder %v901, 0
      %vm1146 = vcmp.lt.s32.totalorder %v908, 0
      %vm1147 = vcmp.lt.s32.totalorder %v915, 0
      %vm1148 = vcmp.lt.s32.totalorder %v922, 0
      %vm1149 = vcmp.lt.s32.totalorder %v929, 0
      %vm1150 = vcmp.lt.s32.totalorder %v936, 0
      %vm1151 = vcmp.lt.s32.totalorder %v943, 0
      %vm1152 = vcmp.lt.s32.totalorder %v950, 0
      %vm1153 = vcmp.lt.s32.totalorder %v957, 0
      %vm1154 = vcmp.lt.s32.totalorder %v964, 0
      %vm1155 = vcmp.lt.s32.totalorder %v971, 0
      %vm1156 = vcmp.lt.s32.totalorder %v978, 0
      %vm1157 = vcmp.lt.s32.totalorder %v985, 0
      %vm1158 = vcmp.lt.s32.totalorder %v992, 0
      %vm1159 = vcmp.lt.s32.totalorder %v999, 0
      %vm1160 = vcmp.lt.s32.totalorder %v1006, 0
      %vm1161 = vcmp.lt.s32.totalorder %v1013, 0
      %vm1162 = vcmp.lt.s32.totalorder %v1020, 0
      %vm1163 = vcmp.lt.s32.totalorder %v1027, 0
      %vm1164 = vcmp.lt.s32.totalorder %v1034, 0
      %vm1165 = vcmp.lt.s32.totalorder %v1041, 0
      %vm1166 = vcmp.lt.s32.totalorder %v1048, 0
      %vm1167 = vcmp.lt.s32.totalorder %v1055, 0
      %vm1168 = vcmp.lt.s32.totalorder %v1062, 0
      %vm1169 = vcmp.lt.s32.totalorder %v1069, 0
      %vm1170 = vcmp.lt.s32.totalorder %v1076, 0
      %vm1171 = vcmp.lt.s32.totalorder %v1083, 0
      %vm1172 = vcmp.lt.s32.totalorder %v1090, 0
      %vm1173 = vcmp.lt.s32.totalorder %v1097, 0
      %vm1174 = vcmp.lt.s32.totalorder %v1104, 0
      %vm1175 = vcmp.lt.s32.totalorder %v1111, 0
      %vm1176 = vmand %vm1144, %vm1112
      %vm1177 = vmand %vm1145, %vm1113
      %vm1178 = vmand %vm1146, %vm1114
      %vm1179 = vmand %vm1147, %vm1115
      %vm1180 = vmand %vm1148, %vm1116
      %vm1181 = vmand %vm1149, %vm1117
      %vm1182 = vmand %vm1150, %vm1118
      %vm1183 = vmand %vm1151, %vm1119
      %vm1184 = vmand %vm1152, %vm1120
      %vm1185 = vmand %vm1153, %vm1121
      %vm1186 = vmand %vm1154, %vm1122
      %vm1187 = vmand %vm1155, %vm1123
      %vm1188 = vmand %vm1156, %vm1124
      %vm1189 = vmand %vm1157, %vm1125
      %vm1190 = vmand %vm1158, %vm1126
      %vm1191 = vmand %vm1159, %vm1127
      %vm1192 = vmand %vm1160, %vm1128
      %vm1193 = vmand %vm1161, %vm1129
      %vm1194 = vmand %vm1162, %vm1130
      %vm1195 = vmand %vm1163, %vm1131
      %vm1196 = vmand %vm1164, %vm1132
      %vm1197 = vmand %vm1165, %vm1133
      %vm1198 = vmand %vm1166, %vm1134
      %vm1199 = vmand %vm1167, %vm1135
      %vm1200 = vmand %vm1168, %vm1136
      %vm1201 = vmand %vm1169, %vm1137
      %vm1202 = vmand %vm1170, %vm1138
      %vm1203 = vmand %vm1171, %vm1139
      %vm1204 = vmand %vm1172, %vm1140
      %vm1205 = vmand %vm1173, %vm1141
      %vm1206 = vmand %vm1174, %vm1142
      %vm1207 = vmand %vm1175, %vm1143
      %v1208 = vadd.s32 %v894, 16
      %v1209 = vadd.s32 %v901, 16
      %v1210 = vadd.s32 %v908, 16
      %v1211 = vadd.s32 %v915, 16
      %v1212 = vadd.s32 %v922, 16
      %v1213 = vadd.s32 %v929, 16
      %v1214 = vadd.s32 %v936, 16
      %v1215 = vadd.s32 %v943, 16
      %v1216 = vadd.s32 %v950, 16
      %v1217 = vadd.s32 %v957, 16
      %v1218 = vadd.s32 %v964, 16
      %v1219 = vadd.s32 %v971, 16
      %v1220 = vadd.s32 %v978, 16
      %v1221 = vadd.s32 %v985, 16
      %v1222 = vadd.s32 %v992, 16
      %v1223 = vadd.s32 %v999, 16
      %v1224 = vadd.s32 %v1006, 16
      %v1225 = vadd.s32 %v1013, 16
      %v1226 = vadd.s32 %v1020, 16
      %v1227 = vadd.s32 %v1027, 16
      %v1228 = vadd.s32 %v1034, 16
      %v1229 = vadd.s32 %v1041, 16
      %v1230 = vadd.s32 %v1048, 16
      %v1231 = vadd.s32 %v1055, 16
      %v1232 = vadd.s32 %v1062, 16
      %v1233 = vadd.s32 %v1069, 16
      %v1234 = vadd.s32 %v1076, 16
      %v1235 = vadd.s32 %v1083, 16
      %v1236 = vadd.s32 %v1090, 16
      %v1237 = vadd.s32 %v1097, 16
      %v1238 = vadd.s32 %v1104, 16
      %v1239 = vadd.s32 %v1111, 16
      %v1240 = vsel %vm1176, %v1208, %v894
      %v1241 = vsel %vm1177, %v1209, %v901
      %v1242 = vsel %vm1178, %v1210, %v908
      %v1243 = vsel %vm1179, %v1211, %v915
      %v1244 = vsel %vm1180, %v1212, %v922
      %v1245 = vsel %vm1181, %v1213, %v929
      %v1246 = vsel %vm1182, %v1214, %v936
      %v1247 = vsel %vm1183, %v1215, %v943
      %v1248 = vsel %vm1184, %v1216, %v950
      %v1249 = vsel %vm1185, %v1217, %v957
      %v1250 = vsel %vm1186, %v1218, %v964
      %v1251 = vsel %vm1187, %v1219, %v971
      %v1252 = vsel %vm1188, %v1220, %v978
      %v1253 = vsel %vm1189, %v1221, %v985
      %v1254 = vsel %vm1190, %v1222, %v992
      %v1255 = vsel %vm1191, %v1223, %v999
      %v1256 = vsel %vm1192, %v1224, %v1006
      %v1257 = vsel %vm1193, %v1225, %v1013
      %v1258 = vsel %vm1194, %v1226, %v1020
      %v1259 = vsel %vm1195, %v1227, %v1027
      %v1260 = vsel %vm1196, %v1228, %v1034
      %v1261 = vsel %vm1197, %v1229, %v1041
      %v1262 = vsel %vm1198, %v1230, %v1048
      %v1263 = vsel %vm1199, %v1231, %v1055
      %v1264 = vsel %vm1200, %v1232, %v1062
      %v1265 = vsel %vm1201, %v1233, %v1069
      %v1266 = vsel %vm1202, %v1234, %v1076
      %v1267 = vsel %vm1203, %v1235, %v1083
      %v1268 = vsel %vm1204, %v1236, %v1090
      %v1269 = vsel %vm1205, %v1237, %v1097
      %v1270 = vsel %vm1206, %v1238, %v1104
      %v1271 = vsel %vm1207, %v1239, %v1111
      %vm1272 = vcmp.gt.s32.totalorder %v1240, 0
      %vm1273 = vcmp.gt.s32.totalorder %v1241, 0
      %vm1274 = vcmp.gt.s32.totalorder %v1242, 0
      %vm1275 = vcmp.gt.s32.totalorder %v1243, 0
      %vm1276 = vcmp.gt.s32.totalorder %v1244, 0
      %vm1277 = vcmp.gt.s32.totalorder %v1245, 0
      %vm1278 = vcmp.gt.s32.totalorder %v1246, 0
      %vm1279 = vcmp.gt.s32.totalorder %v1247, 0
      %vm1280 = vcmp.gt.s32.totalorder %v1248, 0
      %vm1281 = vcmp.gt.s32.totalorder %v1249, 0
      %vm1282 = vcmp.gt.s32.totalorder %v1250, 0
      %vm1283 = vcmp.gt.s32.totalorder %v1251, 0
      %vm1284 = vcmp.gt.s32.totalorder %v1252, 0
      %vm1285 = vcmp.gt.s32.totalorder %v1253, 0
      %vm1286 = vcmp.gt.s32.totalorder %v1254, 0
      %vm1287 = vcmp.gt.s32.totalorder %v1255, 0
      %vm1288 = vcmp.gt.s32.totalorder %v1256, 0
      %vm1289 = vcmp.gt.s32.totalorder %v1257, 0
      %vm1290 = vcmp.gt.s32.totalorder %v1258, 0
      %vm1291 = vcmp.gt.s32.totalorder %v1259, 0
      %vm1292 = vcmp.gt.s32.totalorder %v1260, 0
      %vm1293 = vcmp.gt.s32.totalorder %v1261, 0
      %vm1294 = vcmp.gt.s32.totalorder %v1262, 0
      %vm1295 = vcmp.gt.s32.totalorder %v1263, 0
      %vm1296 = vcmp.gt.s32.totalorder %v1264, 0
      %vm1297 = vcmp.gt.s32.totalorder %v1265, 0
      %vm1298 = vcmp.gt.s32.totalorder %v1266, 0
      %vm1299 = vcmp.gt.s32.totalorder %v1267, 0
      %vm1300 = vcmp.gt.s32.totalorder %v1268, 0
      %vm1301 = vcmp.gt.s32.totalorder %v1269, 0
      %vm1302 = vcmp.gt.s32.totalorder %v1270, 0
      %vm1303 = vcmp.gt.s32.totalorder %v1271, 0
      %vm1304 = vcmp.lt.s32.totalorder %v1240, 15
      %vm1305 = vcmp.lt.s32.totalorder %v1241, 15
      %vm1306 = vcmp.lt.s32.totalorder %v1242, 15
      %vm1307 = vcmp.lt.s32.totalorder %v1243, 15
      %vm1308 = vcmp.lt.s32.totalorder %v1244, 15
      %vm1309 = vcmp.lt.s32.totalorder %v1245, 15
      %vm1310 = vcmp.lt.s32.totalorder %v1246, 15
      %vm1311 = vcmp.lt.s32.totalorder %v1247, 15
      %vm1312 = vcmp.lt.s32.totalorder %v1248, 15
      %vm1313 = vcmp.lt.s32.totalorder %v1249, 15
      %vm1314 = vcmp.lt.s32.totalorder %v1250, 15
      %vm1315 = vcmp.lt.s32.totalorder %v1251, 15
      %vm1316 = vcmp.lt.s32.totalorder %v1252, 15
      %vm1317 = vcmp.lt.s32.totalorder %v1253, 15
      %vm1318 = vcmp.lt.s32.totalorder %v1254, 15
      %vm1319 = vcmp.lt.s32.totalorder %v1255, 15
      %vm1320 = vcmp.lt.s32.totalorder %v1256, 15
      %vm1321 = vcmp.lt.s32.totalorder %v1257, 15
      %vm1322 = vcmp.lt.s32.totalorder %v1258, 15
      %vm1323 = vcmp.lt.s32.totalorder %v1259, 15
      %vm1324 = vcmp.lt.s32.totalorder %v1260, 15
      %vm1325 = vcmp.lt.s32.totalorder %v1261, 15
      %vm1326 = vcmp.lt.s32.totalorder %v1262, 15
      %vm1327 = vcmp.lt.s32.totalorder %v1263, 15
      %vm1328 = vcmp.lt.s32.totalorder %v1264, 15
      %vm1329 = vcmp.lt.s32.totalorder %v1265, 15
      %vm1330 = vcmp.lt.s32.totalorder %v1266, 15
      %vm1331 = vcmp.lt.s32.totalorder %v1267, 15
      %vm1332 = vcmp.lt.s32.totalorder %v1268, 15
      %vm1333 = vcmp.lt.s32.totalorder %v1269, 15
      %vm1334 = vcmp.lt.s32.totalorder %v1270, 15
      %vm1335 = vcmp.lt.s32.totalorder %v1271, 15
      %v1336 = vld [vmem:[#allocation2 + $0x7] sm:$0xff]
      %v1337 = vld [vmem:[#allocation2 + $0xf] sm:$0xff]
      %v1338 = vld [vmem:[#allocation2 + $0x17] sm:$0xff]
      %v1339 = vld [vmem:[#allocation2 + $0x1f] sm:$0xff]
      %v1340 = vld [vmem:[#allocation2 + $0x27] sm:$0xff]
      %v1341 = vld [vmem:[#allocation2 + $0x2f] sm:$0xff]
      %v1342 = vld [vmem:[#allocation2 + $0x37] sm:$0xff]
      %v1343 = vld [vmem:[#allocation2 + $0x3f] sm:$0xff]
      %v1344 = vld [vmem:[#allocation2 + $0x47] sm:$0xff]
      %v1345 = vld [vmem:[#allocation2 + $0x4f] sm:$0xff]
      %v1346 = vld [vmem:[#allocation2 + $0x57] sm:$0xff]
      %v1347 = vld [vmem:[#allocation2 + $0x5f] sm:$0xff]
      %v1348 = vld [vmem:[#allocation2 + $0x67] sm:$0xff]
      %v1349 = vld [vmem:[#allocation2 + $0x6f] sm:$0xff]
      %v1350 = vld [vmem:[#allocation2 + $0x77] sm:$0xff]
      %v1351 = vld [vmem:[#allocation2 + $0x7f] sm:$0xff]
      %v1352 = vld [vmem:[#allocation2 + $0x87] sm:$0xff]
      %v1353 = vld [vmem:[#allocation2 + $0x8f] sm:$0xff]
      %v1354 = vld [vmem:[#allocation2 + $0x97] sm:$0xff]
      %v1355 = vld [vmem:[#allocation2 + $0x9f] sm:$0xff]
      %v1356 = vld [vmem:[#allocation2 + $0xa7] sm:$0xff]
      %v1357 = vld [vmem:[#allocation2 + $0xaf] sm:$0xff]
      %v1358 = vld [vmem:[#allocation2 + $0xb7] sm:$0xff]
      %v1359 = vld [vmem:[#allocation2 + $0xbf] sm:$0xff]
      %v1360 = vld [vmem:[#allocation2 + $0xc7] sm:$0xff]
      %v1361 = vld [vmem:[#allocation2 + $0xcf] sm:$0xff]
      %v1362 = vld [vmem:[#allocation2 + $0xd7] sm:$0xff]
      %v1363 = vld [vmem:[#allocation2 + $0xdf] sm:$0xff]
      %v1364 = vld [vmem:[#allocation2 + $0xe7] sm:$0xff]
      %v1365 = vld [vmem:[#allocation2 + $0xef] sm:$0xff]
      %v1366 = vld [vmem:[#allocation2 + $0xf7] sm:$0xff]
      %v1367 = vld [vmem:[#allocation2 + $0xff] sm:$0xff]
      %v1368 = vsel %vm1272, %v1336, 0.0
      %v1369 = vsel %vm1273, %v1337, 0.0
      %v1370 = vsel %vm1274, %v1338, 0.0
      %v1371 = vsel %vm1275, %v1339, 0.0
      %v1372 = vsel %vm1276, %v1340, 0.0
      %v1373 = vsel %vm1277, %v1341, 0.0
      %v1374 = vsel %vm1278, %v1342, 0.0
      %v1375 = vsel %vm1279, %v1343, 0.0
      %v1376 = vsel %vm1280, %v1344, 0.0
      %v1377 = vsel %vm1281, %v1345, 0.0
      %v1378 = vsel %vm1282, %v1346, 0.0
      %v1379 = vsel %vm1283, %v1347, 0.0
      %v1380 = vsel %vm1284, %v1348, 0.0
      %v1381 = vsel %vm1285, %v1349, 0.0
      %v1382 = vsel %vm1286, %v1350, 0.0
      %v1383 = vsel %vm1287, %v1351, 0.0
      %v1384 = vsel %vm1288, %v1352, 0.0
      %v1385 = vsel %vm1289, %v1353, 0.0
      %v1386 = vsel %vm1290, %v1354, 0.0
      %v1387 = vsel %vm1291, %v1355, 0.0
      %v1388 = vsel %vm1292, %v1356, 0.0
      %v1389 = vsel %vm1293, %v1357, 0.0
      %v1390 = vsel %vm1294, %v1358, 0.0
      %v1391 = vsel %vm1295, %v1359, 0.0
      %v1392 = vsel %vm1296, %v1360, 0.0
      %v1393 = vsel %vm1297, %v1361, 0.0
      %v1394 = vsel %vm1298, %v1362, 0.0
      %v1395 = vsel %vm1299, %v1363, 0.0
      %v1396 = vsel %vm1300, %v1364, 0.0
      %v1397 = vsel %vm1301, %v1365, 0.0
      %v1398 = vsel %vm1302, %v1366, 0.0
      %v1399 = vsel %vm1303, %v1367, 0.0
      %v1400 = vld [vmem:[%s4] sm:$0x1]
      %v1401 = vperm.slane %v1400, 0
      %v1402 = vmul.f32 %v1368, %v1401
      %v1403 = vmul.f32 %v1369, %v1401
      %v1404 = vmul.f32 %v1370, %v1401
      %v1405 = vmul.f32 %v1371, %v1401
      %v1406 = vmul.f32 %v1372, %v1401
      %v1407 = vmul.f32 %v1373, %v1401
      %v1408 = vmul.f32 %v1374, %v1401
      %v1409 = vmul.f32 %v1375, %v1401
      %v1410 = vmul.f32 %v1376, %v1401
      %v1411 = vmul.f32 %v1377, %v1401
      %v1412 = vmul.f32 %v1378, %v1401
      %v1413 = vmul.f32 %v1379, %v1401
      %v1414 = vmul.f32 %v1380, %v1401
      %v1415 = vmul.f32 %v1381, %v1401
      %v1416 = vmul.f32 %v1382, %v1401
      %v1417 = vmul.f32 %v1383, %v1401
      %v1418 = vmul.f32 %v1384, %v1401
      %v1419 = vmul.f32 %v1385, %v1401
      %v1420 = vmul.f32 %v1386, %v1401
      %v1421 = vmul.f32 %v1387, %v1401
      %v1422 = vmul.f32 %v1388, %v1401
      %v1423 = vmul.f32 %v1389, %v1401
      %v1424 = vmul.f32 %v1390, %v1401
      %v1425 = vmul.f32 %v1391, %v1401
      %v1426 = vmul.f32 %v1392, %v1401
      %v1427 = vmul.f32 %v1393, %v1401
      %v1428 = vmul.f32 %v1394, %v1401
      %v1429 = vmul.f32 %v1395, %v1401
      %v1430 = vmul.f32 %v1396, %v1401
      %v1431 = vmul.f32 %v1397, %v1401
      %v1432 = vmul.f32 %v1398, %v1401
      %v1433 = vmul.f32 %v1399, %v1401
      %v1434 = vadd.f32 %v1402, 0.0
      %v1435 = vadd.f32 %v1403, 0.0
      %v1436 = vadd.f32 %v1404, 0.0
      %v1437 = vadd.f32 %v1405, 0.0
      %v1438 = vadd.f32 %v1406, 0.0
      %v1439 = vadd.f32 %v1407, 0.0
      %v1440 = vadd.f32 %v1408, 0.0
      %v1441 = vadd.f32 %v1409, 0.0
      %v1442 = vadd.f32 %v1410, 0.0
      %v1443 = vadd.f32 %v1411, 0.0
      %v1444 = vadd.f32 %v1412, 0.0
      %v1445 = vadd.f32 %v1413, 0.0
      %v1446 = vadd.f32 %v1414, 0.0
      %v1447 = vadd.f32 %v1415, 0.0
      %v1448 = vadd.f32 %v1416, 0.0
      %v1449 = vadd.f32 %v1417, 0.0
      %v1450 = vadd.f32 %v1418, 0.0
      %v1451 = vadd.f32 %v1419, 0.0
      %v1452 = vadd.f32 %v1420, 0.0
      %v1453 = vadd.f32 %v1421, 0.0
      %v1454 = vadd.f32 %v1422, 0.0
      %v1455 = vadd.f32 %v1423, 0.0
      %v1456 = vadd.f32 %v1424, 0.0
      %v1457 = vadd.f32 %v1425, 0.0
      %v1458 = vadd.f32 %v1426, 0.0
      %v1459 = vadd.f32 %v1427, 0.0
      %v1460 = vadd.f32 %v1428, 0.0
      %v1461 = vadd.f32 %v1429, 0.0
      %v1462 = vadd.f32 %v1430, 0.0
      %v1463 = vadd.f32 %v1431, 0.0
      %v1464 = vadd.f32 %v1432, 0.0
      %v1465 = vadd.f32 %v1433, 0.0
      %v1466 = vld [vmem:[#allocation2 + $0x8] sm:$0xff]
      %v1467 = vld [vmem:[#allocation2 + $0x10] sm:$0xff]
      %v1468 = vld [vmem:[#allocation2 + $0x18] sm:$0xff]
      %v1469 = vld [vmem:[#allocation2 + $0x20] sm:$0xff]
      %v1470 = vld [vmem:[#allocation2 + $0x28] sm:$0xff]
      %v1471 = vld [vmem:[#allocation2 + $0x30] sm:$0xff]
      %v1472 = vld [vmem:[#allocation2 + $0x38] sm:$0xff]
      %v1473 = vld [vmem:[#allocation2 + $0x40] sm:$0xff]
      %v1474 = vld [vmem:[#allocation2 + $0x48] sm:$0xff]
      %v1475 = vld [vmem:[#allocation2 + $0x50] sm:$0xff]
      %v1476 = vld [vmem:[#allocation2 + $0x58] sm:$0xff]
      %v1477 = vld [vmem:[#allocation2 + $0x60] sm:$0xff]
      %v1478 = vld [vmem:[#allocation2 + $0x68] sm:$0xff]
      %v1479 = vld [vmem:[#allocation2 + $0x70] sm:$0xff]
      %v1480 = vld [vmem:[#allocation2 + $0x78] sm:$0xff]
      %v1481 = vld [vmem:[#allocation2 + $0x80] sm:$0xff]
      %v1482 = vld [vmem:[#allocation2 + $0x88] sm:$0xff]
      %v1483 = vld [vmem:[#allocation2 + $0x90] sm:$0xff]
      %v1484 = vld [vmem:[#allocation2 + $0x98] sm:$0xff]
      %v1485 = vld [vmem:[#allocation2 + $0xa0] sm:$0xff]
      %v1486 = vld [vmem:[#allocation2 + $0xa8] sm:$0xff]
      %v1487 = vld [vmem:[#allocation2 + $0xb0] sm:$0xff]
      %v1488 = vld [vmem:[#allocation2 + $0xb8] sm:$0xff]
      %v1489 = vld [vmem:[#allocation2 + $0xc0] sm:$0xff]
      %v1490 = vld [vmem:[#allocation2 + $0xc8] sm:$0xff]
      %v1491 = vld [vmem:[#allocation2 + $0xd0] sm:$0xff]
      %v1492 = vld [vmem:[#allocation2 + $0xd8] sm:$0xff]
      %v1493 = vld [vmem:[#allocation2 + $0xe0] sm:$0xff]
      %v1494 = vld [vmem:[#allocation2 + $0xe8] sm:$0xff]
      %v1495 = vld [vmem:[#allocation2 + $0xf0] sm:$0xff]
      %v1496 = vld [vmem:[#allocation2 + $0xf8] sm:$0xff]
      %v1497 = vld [vmem:[#allocation2 + $0x100] sm:$0xff]
      %v1498 = vld [vmem:[%s4 + $0x1] sm:$0x1]
      %v1499 = vperm.slane %v1498, 0
      %v1500 = vmul.f32 %v1466, %v1499
      %v1501 = vmul.f32 %v1467, %v1499
      %v1502 = vmul.f32 %v1468, %v1499
      %v1503 = vmul.f32 %v1469, %v1499
      %v1504 = vmul.f32 %v1470, %v1499
      %v1505 = vmul.f32 %v1471, %v1499
      %v1506 = vmul.f32 %v1472, %v1499
      %v1507 = vmul.f32 %v1473, %v1499
      %v1508 = vmul.f32 %v1474, %v1499
      %v1509 = vmul.f32 %v1475, %v1499
      %v1510 = vmul.f32 %v1476, %v1499
      %v1511 = vmul.f32 %v1477, %v1499
      %v1512 = vmul.f32 %v1478, %v1499
      %v1513 = vmul.f32 %v1479, %v1499
      %v1514 = vmul.f32 %v1480, %v1499
      %v1515 = vmul.f32 %v1481, %v1499
      %v1516 = vmul.f32 %v1482, %v1499
      %v1517 = vmul.f32 %v1483, %v1499
      %v1518 = vmul.f32 %v1484, %v1499
      %v1519 = vmul.f32 %v1485, %v1499
      %v1520 = vmul.f32 %v1486, %v1499
      %v1521 = vmul.f32 %v1487, %v1499
      %v1522 = vmul.f32 %v1488, %v1499
      %v1523 = vmul.f32 %v1489, %v1499
      %v1524 = vmul.f32 %v1490, %v1499
      %v1525 = vmul.f32 %v1491, %v1499
      %v1526 = vmul.f32 %v1492, %v1499
      %v1527 = vmul.f32 %v1493, %v1499
      %v1528 = vmul.f32 %v1494, %v1499
      %v1529 = vmul.f32 %v1495, %v1499
      %v1530 = vmul.f32 %v1496, %v1499
      %v1531 = vmul.f32 %v1497, %v1499
      %v1532 = vadd.f32 %v1434, %v1500
      %v1533 = vadd.f32 %v1435, %v1501
      %v1534 = vadd.f32 %v1436, %v1502
      %v1535 = vadd.f32 %v1437, %v1503
      %v1536 = vadd.f32 %v1438, %v1504
      %v1537 = vadd.f32 %v1439, %v1505
      %v1538 = vadd.f32 %v1440, %v1506
      %v1539 = vadd.f32 %v1441, %v1507
      %v1540 = vadd.f32 %v1442, %v1508
      %v1541 = vadd.f32 %v1443, %v1509
      %v1542 = vadd.f32 %v1444, %v1510
      %v1543 = vadd.f32 %v1445, %v1511
      %v1544 = vadd.f32 %v1446, %v1512
      %v1545 = vadd.f32 %v1447, %v1513
      %v1546 = vadd.f32 %v1448, %v1514
      %v1547 = vadd.f32 %v1449, %v1515
      %v1548 = vadd.f32 %v1450, %v1516
      %v1549 = vadd.f32 %v1451, %v1517
      %v1550 = vadd.f32 %v1452, %v1518
      %v1551 = vadd.f32 %v1453, %v1519
      %v1552 = vadd.f32 %v1454, %v1520
      %v1553 = vadd.f32 %v1455, %v1521
      %v1554 = vadd.f32 %v1456, %v1522
      %v1555 = vadd.f32 %v1457, %v1523
      %v1556 = vadd.f32 %v1458, %v1524
      %v1557 = vadd.f32 %v1459, %v1525
      %v1558 = vadd.f32 %v1460, %v1526
      %v1559 = vadd.f32 %v1461, %v1527
      %v1560 = vadd.f32 %v1462, %v1528
      %v1561 = vadd.f32 %v1463, %v1529
      %v1562 = vadd.f32 %v1464, %v1530
      %v1563 = vadd.f32 %v1465, %v1531
      %v1564 = vld [vmem:[#allocation2 + $0x9] sm:$0xff]
      %v1565 = vld [vmem:[#allocation2 + $0x11] sm:$0xff]
      %v1566 = vld [vmem:[#allocation2 + $0x19] sm:$0xff]
      %v1567 = vld [vmem:[#allocation2 + $0x21] sm:$0xff]
      %v1568 = vld [vmem:[#allocation2 + $0x29] sm:$0xff]
      %v1569 = vld [vmem:[#allocation2 + $0x31] sm:$0xff]
      %v1570 = vld [vmem:[#allocation2 + $0x39] sm:$0xff]
      %v1571 = vld [vmem:[#allocation2 + $0x41] sm:$0xff]
      %v1572 = vld [vmem:[#allocation2 + $0x49] sm:$0xff]
      %v1573 = vld [vmem:[#allocation2 + $0x51] sm:$0xff]
      %v1574 = vld [vmem:[#allocation2 + $0x59] sm:$0xff]
      %v1575 = vld [vmem:[#allocation2 + $0x61] sm:$0xff]
      %v1576 = vld [vmem:[#allocation2 + $0x69] sm:$0xff]
      %v1577 = vld [vmem:[#allocation2 + $0x71] sm:$0xff]
      %v1578 = vld [vmem:[#allocation2 + $0x79] sm:$0xff]
      %v1579 = vld [vmem:[#allocation2 + $0x81] sm:$0xff]
      %v1580 = vld [vmem:[#allocation2 + $0x89] sm:$0xff]
      %v1581 = vld [vmem:[#allocation2 + $0x91] sm:$0xff]
      %v1582 = vld [vmem:[#allocation2 + $0x99] sm:$0xff]
      %v1583 = vld [vmem:[#allocation2 + $0xa1] sm:$0xff]
      %v1584 = vld [vmem:[#allocation2 + $0xa9] sm:$0xff]
      %v1585 = vld [vmem:[#allocation2 + $0xb1] sm:$0xff]
      %v1586 = vld [vmem:[#allocation2 + $0xb9] sm:$0xff]
      %v1587 = vld [vmem:[#allocation2 + $0xc1] sm:$0xff]
      %v1588 = vld [vmem:[#allocation2 + $0xc9] sm:$0xff]
      %v1589 = vld [vmem:[#allocation2 + $0xd1] sm:$0xff]
      %v1590 = vld [vmem:[#allocation2 + $0xd9] sm:$0xff]
      %v1591 = vld [vmem:[#allocation2 + $0xe1] sm:$0xff]
      %v1592 = vld [vmem:[#allocation2 + $0xe9] sm:$0xff]
      %v1593 = vld [vmem:[#allocation2 + $0xf1] sm:$0xff]
      %v1594 = vld [vmem:[#allocation2 + $0xf9] sm:$0xff]
      %v1595 = vld [vmem:[#allocation2 + $0x101] sm:$0xff]
      %v1596 = vsel %vm1304, %v1564, 0.0
      %v1597 = vsel %vm1305, %v1565, 0.0
      %v1598 = vsel %vm1306, %v1566, 0.0
      %v1599 = vsel %vm1307, %v1567, 0.0
      %v1600 = vsel %vm1308, %v1568, 0.0
      %v1601 = vsel %vm1309, %v1569, 0.0
      %v1602 = vsel %vm1310, %v1570, 0.0
      %v1603 = vsel %vm1311, %v1571, 0.0
      %v1604 = vsel %vm1312, %v1572, 0.0
      %v1605 = vsel %vm1313, %v1573, 0.0
      %v1606 = vsel %vm1314, %v1574, 0.0
      %v1607 = vsel %vm1315, %v1575, 0.0
      %v1608 = vsel %vm1316, %v1576, 0.0
      %v1609 = vsel %vm1317, %v1577, 0.0
      %v1610 = vsel %vm1318, %v1578, 0.0
      %v1611 = vsel %vm1319, %v1579, 0.0
      %v1612 = vsel %vm1320, %v1580, 0.0
      %v1613 = vsel %vm1321, %v1581, 0.0
      %v1614 = vsel %vm1322, %v1582, 0.0
      %v1615 = vsel %vm1323, %v1583, 0.0
      %v1616 = vsel %vm1324, %v1584, 0.0
      %v1617 = vsel %vm1325, %v1585, 0.0
      %v1618 = vsel %vm1326, %v1586, 0.0
      %v1619 = vsel %vm1327, %v1587, 0.0
      %v1620 = vsel %vm1328, %v1588, 0.0
      %v1621 = vsel %vm1329, %v1589, 0.0
      %v1622 = vsel %vm1330, %v1590, 0.0
      %v1623 = vsel %vm1331, %v1591, 0.0
      %v1624 = vsel %vm1332, %v1592, 0.0
      %v1625 = vsel %vm1333, %v1593, 0.0
      %v1626 = vsel %vm1334, %v1594, 0.0
      %v1627 = vsel %vm1335, %v1595, 0.0
      %v1628 = vld [vmem:[%s4 + $0x2] sm:$0x1]
      %v1629 = vperm.slane %v1628, 0
      %v1630 = vmul.f32 %v1596, %v1629
      %v1631 = vmul.f32 %v1597, %v1629
      %v1632 = vmul.f32 %v1598, %v1629
      %v1633 = vmul.f32 %v1599, %v1629
      %v1634 = vmul.f32 %v1600, %v1629
      %v1635 = vmul.f32 %v1601, %v1629
      %v1636 = vmul.f32 %v1602, %v1629
      %v1637 = vmul.f32 %v1603, %v1629
      %v1638 = vmul.f32 %v1604, %v1629
      %v1639 = vmul.f32 %v1605, %v1629
      %v1640 = vmul.f32 %v1606, %v1629
      %v1641 = vmul.f32 %v1607, %v1629
      %v1642 = vmul.f32 %v1608, %v1629
      %v1643 = vmul.f32 %v1609, %v1629
      %v1644 = vmul.f32 %v1610, %v1629
      %v1645 = vmul.f32 %v1611, %v1629
      %v1646 = vmul.f32 %v1612, %v1629
      %v1647 = vmul.f32 %v1613, %v1629
      %v1648 = vmul.f32 %v1614, %v1629
      %v1649 = vmul.f32 %v1615, %v1629
      %v1650 = vmul.f32 %v1616, %v1629
      %v1651 = vmul.f32 %v1617, %v1629
      %v1652 = vmul.f32 %v1618, %v1629
      %v1653 = vmul.f32 %v1619, %v1629
      %v1654 = vmul.f32 %v1620, %v1629
      %v1655 = vmul.f32 %v1621, %v1629
      %v1656 = vmul.f32 %v1622, %v1629
      %v1657 = vmul.f32 %v1623, %v1629
      %v1658 = vmul.f32 %v1624, %v1629
      %v1659 = vmul.f32 %v1625, %v1629
      %v1660 = vmul.f32 %v1626, %v1629
      %v1661 = vmul.f32 %v1627, %v1629
      %v1662 = vadd.f32 %v1532, %v1630
      %v1663 = vadd.f32 %v1533, %v1631
      %v1664 = vadd.f32 %v1534, %v1632
      %v1665 = vadd.f32 %v1535, %v1633
      %v1666 = vadd.f32 %v1536, %v1634
      %v1667 = vadd.f32 %v1537, %v1635
      %v1668 = vadd.f32 %v1538, %v1636
      %v1669 = vadd.f32 %v1539, %v1637
      %v1670 = vadd.f32 %v1540, %v1638
      %v1671 = vadd.f32 %v1541, %v1639
      %v1672 = vadd.f32 %v1542, %v1640
      %v1673 = vadd.f32 %v1543, %v1641
      %v1674 = vadd.f32 %v1544, %v1642
      %v1675 = vadd.f32 %v1545, %v1643
      %v1676 = vadd.f32 %v1546, %v1644
      %v1677 = vadd.f32 %v1547, %v1645
      %v1678 = vadd.f32 %v1548, %v1646
      %v1679 = vadd.f32 %v1549, %v1647
      %v1680 = vadd.f32 %v1550, %v1648
      %v1681 = vadd.f32 %v1551, %v1649
      %v1682 = vadd.f32 %v1552, %v1650
      %v1683 = vadd.f32 %v1553, %v1651
      %v1684 = vadd.f32 %v1554, %v1652
      %v1685 = vadd.f32 %v1555, %v1653
      %v1686 = vadd.f32 %v1556, %v1654
      %v1687 = vadd.f32 %v1557, %v1655
      %v1688 = vadd.f32 %v1558, %v1656
      %v1689 = vadd.f32 %v1559, %v1657
      %v1690 = vadd.f32 %v1560, %v1658
      %v1691 = vadd.f32 %v1561, %v1659
      %v1692 = vadd.f32 %v1562, %v1660
      %v1693 = vadd.f32 %v1563, %v1661
      %v1694 = vld [vmem:[#allocation2 + $0x107] sm:$0xff]
      %v1695 = vld [vmem:[#allocation2 + $0x10f] sm:$0xff]
      %v1696 = vsel %vm1272, %v1338, 0.0
      %v1697 = vsel %vm1273, %v1339, 0.0
      %v1698 = vsel %vm1274, %v1340, 0.0
      %v1699 = vsel %vm1275, %v1341, 0.0
      %v1700 = vsel %vm1276, %v1342, 0.0
      %v1701 = vsel %vm1277, %v1343, 0.0
      %v1702 = vsel %vm1278, %v1344, 0.0
      %v1703 = vsel %vm1279, %v1345, 0.0
      %v1704 = vsel %vm1280, %v1346, 0.0
      %v1705 = vsel %vm1281, %v1347, 0.0
      %v1706 = vsel %vm1282, %v1348, 0.0
      %v1707 = vsel %vm1283, %v1349, 0.0
      %v1708 = vsel %vm1284, %v1350, 0.0
      %v1709 = vsel %vm1285, %v1351, 0.0
      %v1710 = vsel %vm1286, %v1352, 0.0
      %v1711 = vsel %vm1287, %v1353, 0.0
      %v1712 = vsel %vm1288, %v1354, 0.0
      %v1713 = vsel %vm1289, %v1355, 0.0
      %v1714 = vsel %vm1290, %v1356, 0.0
      %v1715 = vsel %vm1291, %v1357, 0.0
      %v1716 = vsel %vm1292, %v1358, 0.0
      %v1717 = vsel %vm1293, %v1359, 0.0
      %v1718 = vsel %vm1294, %v1360, 0.0
      %v1719 = vsel %vm1295, %v1361, 0.0
      %v1720 = vsel %vm1296, %v1362, 0.0
      %v1721 = vsel %vm1297, %v1363, 0.0
      %v1722 = vsel %vm1298, %v1364, 0.0
      %v1723 = vsel %vm1299, %v1365, 0.0
      %v1724 = vsel %vm1300, %v1366, 0.0
      %v1725 = vsel %vm1301, %v1367, 0.0
      %v1726 = vsel %vm1302, %v1694, 0.0
      %v1727 = vsel %vm1303, %v1695, 0.0
      %v1728 = vld [vmem:[%s4 + $0x3] sm:$0x1]
      %v1729 = vperm.slane %v1728, 0
      %v1730 = vmul.f32 %v1696, %v1729
      %v1731 = vmul.f32 %v1697, %v1729
      %v1732 = vmul.f32 %v1698, %v1729
      %v1733 = vmul.f32 %v1699, %v1729
      %v1734 = vmul.f32 %v1700, %v1729
      %v1735 = vmul.f32 %v1701, %v1729
      %v1736 = vmul.f32 %v1702, %v1729
      %v1737 = vmul.f32 %v1703, %v1729
      %v1738 = vmul.f32 %v1704, %v1729
      %v1739 = vmul.f32 %v1705, %v1729
      %v1740 = vmul.f32 %v1706, %v1729
      %v1741 = vmul.f32 %v1707, %v1729
      %v1742 = vmul.f32 %v1708, %v1729
      %v1743 = vmul.f32 %v1709, %v1729
      %v1744 = vmul.f32 %v1710, %v1729
      %v1745 = vmul.f32 %v1711, %v1729
      %v1746 = vmul.f32 %v1712, %v1729
      %v1747 = vmul.f32 %v1713, %v1729
      %v1748 = vmul.f32 %v1714, %v1729
      %v1749 = vmul.f32 %v1715, %v1729
      %v1750 = vmul.f32 %v1716, %v1729
      %v1751 = vmul.f32 %v1717, %v1729
      %v1752 = vmul.f32 %v1718, %v1729
      %v1753 = vmul.f32 %v1719, %v1729
      %v1754 = vmul.f32 %v1720, %v1729
      %v1755 = vmul.f32 %v1721, %v1729
      %v1756 = vmul.f32 %v1722, %v1729
      %v1757 = vmul.f32 %v1723, %v1729
      %v1758 = vmul.f32 %v1724, %v1729
      %v1759 = vmul.f32 %v1725, %v1729
      %v1760 = vmul.f32 %v1726, %v1729
      %v1761 = vmul.f32 %v1727, %v1729
      %v1762 = vadd.f32 %v1662, %v1730
      %v1763 = vadd.f32 %v1663, %v1731
      %v1764 = vadd.f32 %v1664, %v1732
      %v1765 = vadd.f32 %v1665, %v1733
      %v1766 = vadd.f32 %v1666, %v1734
      %v1767 = vadd.f32 %v1667, %v1735
      %v1768 = vadd.f32 %v1668, %v1736
      %v1769 = vadd.f32 %v1669, %v1737
      %v1770 = vadd.f32 %v1670, %v1738
      %v1771 = vadd.f32 %v1671, %v1739
      %v1772 = vadd.f32 %v1672, %v1740
      %v1773 = vadd.f32 %v1673, %v1741
      %v1774 = vadd.f32 %v1674, %v1742
      %v1775 = vadd.f32 %v1675, %v1743
      %v1776 = vadd.f32 %v1676, %v1744
      %v1777 = vadd.f32 %v1677, %v1745
      %v1778 = vadd.f32 %v1678, %v1746
      %v1779 = vadd.f32 %v1679, %v1747
      %v1780 = vadd.f32 %v1680, %v1748
      %v1781 = vadd.f32 %v1681, %v1749
      %v1782 = vadd.f32 %v1682, %v1750
      %v1783 = vadd.f32 %v1683, %v1751
      %v1784 = vadd.f32 %v1684, %v1752
      %v1785 = vadd.f32 %v1685, %v1753
      %v1786 = vadd.f32 %v1686, %v1754
      %v1787 = vadd.f32 %v1687, %v1755
      %v1788 = vadd.f32 %v1688, %v1756
      %v1789 = vadd.f32 %v1689, %v1757
      %v1790 = vadd.f32 %v1690, %v1758
      %v1791 = vadd.f32 %v1691, %v1759
      %v1792 = vadd.f32 %v1692, %v1760
      %v1793 = vadd.f32 %v1693, %v1761
      %v1794 = vld [vmem:[#allocation2 + $0x108] sm:$0xff]
      %v1795 = vld [vmem:[#allocation2 + $0x110] sm:$0xff]
      %v1796 = vld [vmem:[%s4 + $0x4] sm:$0x1]
      %v1797 = vperm.slane %v1796, 0
      %v1798 = vmul.f32 %v1468, %v1797
      %v1799 = vmul.f32 %v1469, %v1797
      %v1800 = vmul.f32 %v1470, %v1797
      %v1801 = vmul.f32 %v1471, %v1797
      %v1802 = vmul.f32 %v1472, %v1797
      %v1803 = vmul.f32 %v1473, %v1797
      %v1804 = vmul.f32 %v1474, %v1797
      %v1805 = vmul.f32 %v1475, %v1797
      %v1806 = vmul.f32 %v1476, %v1797
      %v1807 = vmul.f32 %v1477, %v1797
      %v1808 = vmul.f32 %v1478, %v1797
      %v1809 = vmul.f32 %v1479, %v1797
      %v1810 = vmul.f32 %v1480, %v1797
      %v1811 = vmul.f32 %v1481, %v1797
      %v1812 = vmul.f32 %v1482, %v1797
      %v1813 = vmul.f32 %v1483, %v1797
      %v1814 = vmul.f32 %v1484, %v1797
      %v1815 = vmul.f32 %v1485, %v1797
      %v1816 = vmul.f32 %v1486, %v1797
      %v1817 = vmul.f32 %v1487, %v1797
      %v1818 = vmul.f32 %v1488, %v1797
      %v1819 = vmul.f32 %v1489, %v1797
      %v1820 = vmul.f32 %v1490, %v1797
      %v1821 = vmul.f32 %v1491, %v1797
      %v1822 = vmul.f32 %v1492, %v1797
      %v1823 = vmul.f32 %v1493, %v1797
      %v1824 = vmul.f32 %v1494, %v1797
      %v1825 = vmul.f32 %v1495, %v1797
      %v1826 = vmul.f32 %v1496, %v1797
      %v1827 = vmul.f32 %v1497, %v1797
      %v1828 = vmul.f32 %v1794, %v1797
      %v1829 = vmul.f32 %v1795, %v1797
      %v1830 = vadd.f32 %v1762, %v1798
      %v1831 = vadd.f32 %v1763, %v1799
      %v1832 = vadd.f32 %v1764, %v1800
      %v1833 = vadd.f32 %v1765, %v1801
      %v1834 = vadd.f32 %v1766, %v1802
      %v1835 = vadd.f32 %v1767, %v1803
      %v1836 = vadd.f32 %v1768, %v1804
      %v1837 = vadd.f32 %v1769, %v1805
      %v1838 = vadd.f32 %v1770, %v1806
      %v1839 = vadd.f32 %v1771, %v1807
      %v1840 = vadd.f32 %v1772, %v1808
      %v1841 = vadd.f32 %v1773, %v1809
      %v1842 = vadd.f32 %v1774, %v1810
      %v1843 = vadd.f32 %v1775, %v1811
      %v1844 = vadd.f32 %v1776, %v1812
      %v1845 = vadd.f32 %v1777, %v1813
      %v1846 = vadd.f32 %v1778, %v1814
      %v1847 = vadd.f32 %v1779, %v1815
      %v1848 = vadd.f32 %v1780, %v1816
      %v1849 = vadd.f32 %v1781, %v1817
      %v1850 = vadd.f32 %v1782, %v1818
      %v1851 = vadd.f32 %v1783, %v1819
      %v1852 = vadd.f32 %v1784, %v1820
      %v1853 = vadd.f32 %v1785, %v1821
      %v1854 = vadd.f32 %v1786, %v1822
      %v1855 = vadd.f32 %v1787, %v1823
      %v1856 = vadd.f32 %v1788, %v1824
      %v1857 = vadd.f32 %v1789, %v1825
      %v1858 = vadd.f32 %v1790, %v1826
      %v1859 = vadd.f32 %v1791, %v1827
      %v1860 = vadd.f32 %v1792, %v1828
      %v1861 = vadd.f32 %v1793, %v1829
      %v1862 = vld [vmem:[#allocation2 + $0x109] sm:$0xff]
      %v1863 = vld [vmem:[#allocation2 + $0x111] sm:$0xff]
      %v1864 = vsel %vm1304, %v1566, 0.0
      %v1865 = vsel %vm1305, %v1567, 0.0
      %v1866 = vsel %vm1306, %v1568, 0.0
      %v1867 = vsel %vm1307, %v1569, 0.0
      %v1868 = vsel %vm1308, %v1570, 0.0
      %v1869 = vsel %vm1309, %v1571, 0.0
      %v1870 = vsel %vm1310, %v1572, 0.0
      %v1871 = vsel %vm1311, %v1573, 0.0
      %v1872 = vsel %vm1312, %v1574, 0.0
      %v1873 = vsel %vm1313, %v1575, 0.0
      %v1874 = vsel %vm1314, %v1576, 0.0
      %v1875 = vsel %vm1315, %v1577, 0.0
      %v1876 = vsel %vm1316, %v1578, 0.0
      %v1877 = vsel %vm1317, %v1579, 0.0
      %v1878 = vsel %vm1318, %v1580, 0.0
      %v1879 = vsel %vm1319, %v1581, 0.0
      %v1880 = vsel %vm1320, %v1582, 0.0
      %v1881 = vsel %vm1321, %v1583, 0.0
      %v1882 = vsel %vm1322, %v1584, 0.0
      %v1883 = vsel %vm1323, %v1585, 0.0
      %v1884 = vsel %vm1324, %v1586, 0.0
      %v1885 = vsel %vm1325, %v1587, 0.0
      %v1886 = vsel %vm1326, %v1588, 0.0
      %v1887 = vsel %vm1327, %v1589, 0.0
      %v1888 = vsel %vm1328, %v1590, 0.0
      %v1889 = vsel %vm1329, %v1591, 0.0
      %v1890 = vsel %vm1330, %v1592, 0.0
      %v1891 = vsel %vm1331, %v1593, 0.0
      %v1892 = vsel %vm1332, %v1594, 0.0
      %v1893 = vsel %vm1333, %v1595, 0.0
      %v1894 = vsel %vm1334, %v1862, 0.0
      %v1895 = vsel %vm1335, %v1863, 0.0
      %v1896 = vld [vmem:[%s4 + $0x5] sm:$0x1]
      %v1897 = vperm.slane %v1896, 0
      %v1898 = vmul.f32 %v1864, %v1897
      %v1899 = vmul.f32 %v1865, %v1897
      %v1900 = vmul.f32 %v1866, %v1897
      %v1901 = vmul.f32 %v1867, %v1897
      %v1902 = vmul.f32 %v1868, %v1897
      %v1903 = vmul.f32 %v1869, %v1897
      %v1904 = vmul.f32 %v1870, %v1897
      %v1905 = vmul.f32 %v1871, %v1897
      %v1906 = vmul.f32 %v1872, %v1897
      %v1907 = vmul.f32 %v1873, %v1897
      %v1908 = vmul.f32 %v1874, %v1897
      %v1909 = vmul.f32 %v1875, %v1897
      %v1910 = vmul.f32 %v1876, %v1897
      %v1911 = vmul.f32 %v1877, %v1897
      %v1912 = vmul.f32 %v1878, %v1897
      %v1913 = vmul.f32 %v1879, %v1897
      %v1914 = vmul.f32 %v1880, %v1897
      %v1915 = vmul.f32 %v1881, %v1897
      %v1916 = vmul.f32 %v1882, %v1897
      %v1917 = vmul.f32 %v1883, %v1897
      %v1918 = vmul.f32 %v1884, %v1897
      %v1919 = vmul.f32 %v1885, %v1897
      %v1920 = vmul.f32 %v1886, %v1897
      %v1921 = vmul.f32 %v1887, %v1897
      %v1922 = vmul.f32 %v1888, %v1897
      %v1923 = vmul.f32 %v1889, %v1897
      %v1924 = vmul.f32 %v1890, %v1897
      %v1925 = vmul.f32 %v1891, %v1897
      %v1926 = vmul.f32 %v1892, %v1897
      %v1927 = vmul.f32 %v1893, %v1897
      %v1928 = vmul.f32 %v1894, %v1897
      %v1929 = vmul.f32 %v1895, %v1897
      %v1930 = vadd.f32 %v1830, %v1898
      %v1931 = vadd.f32 %v1831, %v1899
      %v1932 = vadd.f32 %v1832, %v1900
      %v1933 = vadd.f32 %v1833, %v1901
      %v1934 = vadd.f32 %v1834, %v1902
      %v1935 = vadd.f32 %v1835, %v1903
      %v1936 = vadd.f32 %v1836, %v1904
      %v1937 = vadd.f32 %v1837, %v1905
      %v1938 = vadd.f32 %v1838, %v1906
      %v1939 = vadd.f32 %v1839, %v1907
      %v1940 = vadd.f32 %v1840, %v1908
      %v1941 = vadd.f32 %v1841, %v1909
      %v1942 = vadd.f32 %v1842, %v1910
      %v1943 = vadd.f32 %v1843, %v1911
      %v1944 = vadd.f32 %v1844, %v1912
      %v1945 = vadd.f32 %v1845, %v1913
      %v1946 = vadd.f32 %v1846, %v1914
      %v1947 = vadd.f32 %v1847, %v1915
      %v1948 = vadd.f32 %v1848, %v1916
      %v1949 = vadd.f32 %v1849, %v1917
      %v1950 = vadd.f32 %v1850, %v1918
      %v1951 = vadd.f32 %v1851, %v1919
      %v1952 = vadd.f32 %v1852, %v1920
      %v1953 = vadd.f32 %v1853, %v1921
      %v1954 = vadd.f32 %v1854, %v1922
      %v1955 = vadd.f32 %v1855, %v1923
      %v1956 = vadd.f32 %v1856, %v1924
      %v1957 = vadd.f32 %v1857, %v1925
      %v1958 = vadd.f32 %v1858, %v1926
      %v1959 = vadd.f32 %v1859, %v1927
      %v1960 = vadd.f32 %v1860, %v1928
      %v1961 = vadd.f32 %v1861, %v1929
      %v1962 = vld [vmem:[#allocation2 + $0x117] sm:$0xff]
      %v1963 = vld [vmem:[#allocation2 + $0x11f] sm:$0xff]
      %v1964 = vsel %vm1272, %v1340, 0.0
      %v1965 = vsel %vm1273, %v1341, 0.0
      %v1966 = vsel %vm1274, %v1342, 0.0
      %v1967 = vsel %vm1275, %v1343, 0.0
      %v1968 = vsel %vm1276, %v1344, 0.0
      %v1969 = vsel %vm1277, %v1345, 0.0
      %v1970 = vsel %vm1278, %v1346, 0.0
      %v1971 = vsel %vm1279, %v1347, 0.0
      %v1972 = vsel %vm1280, %v1348, 0.0
      %v1973 = vsel %vm1281, %v1349, 0.0
      %v1974 = vsel %vm1282, %v1350, 0.0
      %v1975 = vsel %vm1283, %v1351, 0.0
      %v1976 = vsel %vm1284, %v1352, 0.0
      %v1977 = vsel %vm1285, %v1353, 0.0
      %v1978 = vsel %vm1286, %v1354, 0.0
      %v1979 = vsel %vm1287, %v1355, 0.0
      %v1980 = vsel %vm1288, %v1356, 0.0
      %v1981 = vsel %vm1289, %v1357, 0.0
      %v1982 = vsel %vm1290, %v1358, 0.0
      %v1983 = vsel %vm1291, %v1359, 0.0
      %v1984 = vsel %vm1292, %v1360, 0.0
      %v1985 = vsel %vm1293, %v1361, 0.0
      %v1986 = vsel %vm1294, %v1362, 0.0
      %v1987 = vsel %vm1295, %v1363, 0.0
      %v1988 = vsel %vm1296, %v1364, 0.0
      %v1989 = vsel %vm1297, %v1365, 0.0
      %v1990 = vsel %vm1298, %v1366, 0.0
      %v1991 = vsel %vm1299, %v1367, 0.0
      %v1992 = vsel %vm1300, %v1694, 0.0
      %v1993 = vsel %vm1301, %v1695, 0.0
      %v1994 = vsel %vm1302, %v1962, 0.0
      %v1995 = vsel %vm1303, %v1963, 0.0
      %v1996 = vld [vmem:[%s4 + $0x6] sm:$0x1]
      %v1997 = vperm.slane %v1996, 0
      %v1998 = vmul.f32 %v1964, %v1997
      %v1999 = vmul.f32 %v1965, %v1997
      %v2000 = vmul.f32 %v1966, %v1997
      %v2001 = vmul.f32 %v1967, %v1997
      %v2002 = vmul.f32 %v1968, %v1997
      %v2003 = vmul.f32 %v1969, %v1997
      %v2004 = vmul.f32 %v1970, %v1997
      %v2005 = vmul.f32 %v1971, %v1997
      %v2006 = vmul.f32 %v1972, %v1997
      %v2007 = vmul.f32 %v1973, %v1997
      %v2008 = vmul.f32 %v1974, %v1997
      %v2009 = vmul.f32 %v1975, %v1997
      %v2010 = vmul.f32 %v1976, %v1997
      %v2011 = vmul.f32 %v1977, %v1997
      %v2012 = vmul.f32 %v1978, %v1997
      %v2013 = vmul.f32 %v1979, %v1997
      %v2014 = vmul.f32 %v1980, %v1997
      %v2015 = vmul.f32 %v1981, %v1997
      %v2016 = vmul.f32 %v1982, %v1997
      %v2017 = vmul.f32 %v1983, %v1997
      %v2018 = vmul.f32 %v1984, %v1997
      %v2019 = vmul.f32 %v1985, %v1997
      %v2020 = vmul.f32 %v1986, %v1997
      %v2021 = vmul.f32 %v1987, %v1997
      %v2022 = vmul.f32 %v1988, %v1997
      %v2023 = vmul.f32 %v1989, %v1997
      %v2024 = vmul.f32 %v1990, %v1997
      %v2025 = vmul.f32 %v1991, %v1997
      %v2026 = vmul.f32 %v1992, %v1997
      %v2027 = vmul.f32 %v1993, %v1997
      %v2028 = vmul.f32 %v1994, %v1997
      %v2029 = vmul.f32 %v1995, %v1997
      %v2030 = vadd.f32 %v1930, %v1998
      %v2031 = vadd.f32 %v1931, %v1999
      %v2032 = vadd.f32 %v1932, %v2000
      %v2033 = vadd.f32 %v1933, %v2001
      %v2034 = vadd.f32 %v1934, %v2002
      %v2035 = vadd.f32 %v1935, %v2003
      %v2036 = vadd.f32 %v1936, %v2004
      %v2037 = vadd.f32 %v1937, %v2005
      %v2038 = vadd.f32 %v1938, %v2006
      %v2039 = vadd.f32 %v1939, %v2007
      %v2040 = vadd.f32 %v1940, %v2008
      %v2041 = vadd.f32 %v1941, %v2009
      %v2042 = vadd.f32 %v1942, %v2010
      %v2043 = vadd.f32 %v1943, %v2011
      %v2044 = vadd.f32 %v1944, %v2012
      %v2045 = vadd.f32 %v1945, %v2013
      %v2046 = vadd.f32 %v1946, %v2014
      %v2047 = vadd.f32 %v1947, %v2015
      %v2048 = vadd.f32 %v1948, %v2016
      %v2049 = vadd.f32 %v1949, %v2017
      %v2050 = vadd.f32 %v1950, %v2018
      %v2051 = vadd.f32 %v1951, %v2019
      %v2052 = vadd.f32 %v1952, %v2020
      %v2053 = vadd.f32 %v1953, %v2021
      %v2054 = vadd.f32 %v1954, %v2022
      %v2055 = vadd.f32 %v1955, %v2023
      %v2056 = vadd.f32 %v1956, %v2024
      %v2057 = vadd.f32 %v1957, %v2025
      %v2058 = vadd.f32 %v1958, %v2026
      %v2059 = vadd.f32 %v1959, %v2027
      %v2060 = vadd.f32 %v1960, %v2028
      %v2061 = vadd.f32 %v1961, %v2029
      %v2062 = vld [vmem:[#allocation2 + $0x118] sm:$0xff]
      %v2063 = vld [vmem:[#allocation2 + $0x120] sm:$0xff]
      %v2064 = vld [vmem:[%s4 + $0x7] sm:$0x1]
      %v2065 = vperm.slane %v2064, 0
      %v2066 = vmul.f32 %v1470, %v2065
      %v2067 = vmul.f32 %v1471, %v2065
      %v2068 = vmul.f32 %v1472, %v2065
      %v2069 = vmul.f32 %v1473, %v2065
      %v2070 = vmul.f32 %v1474, %v2065
      %v2071 = vmul.f32 %v1475, %v2065
      %v2072 = vmul.f32 %v1476, %v2065
      %v2073 = vmul.f32 %v1477, %v2065
      %v2074 = vmul.f32 %v1478, %v2065
      %v2075 = vmul.f32 %v1479, %v2065
      %v2076 = vmul.f32 %v1480, %v2065
      %v2077 = vmul.f32 %v1481, %v2065
      %v2078 = vmul.f32 %v1482, %v2065
      %v2079 = vmul.f32 %v1483, %v2065
      %v2080 = vmul.f32 %v1484, %v2065
      %v2081 = vmul.f32 %v1485, %v2065
      %v2082 = vmul.f32 %v1486, %v2065
      %v2083 = vmul.f32 %v1487, %v2065
      %v2084 = vmul.f32 %v1488, %v2065
      %v2085 = vmul.f32 %v1489, %v2065
      %v2086 = vmul.f32 %v1490, %v2065
      %v2087 = vmul.f32 %v1491, %v2065
      %v2088 = vmul.f32 %v1492, %v2065
      %v2089 = vmul.f32 %v1493, %v2065
      %v2090 = vmul.f32 %v1494, %v2065
      %v2091 = vmul.f32 %v1495, %v2065
      %v2092 = vmul.f32 %v1496, %v2065
      %v2093 = vmul.f32 %v1497, %v2065
      %v2094 = vmul.f32 %v1794, %v2065
      %v2095 = vmul.f32 %v1795, %v2065
      %v2096 = vmul.f32 %v2062, %v2065
      %v2097 = vmul.f32 %v2063, %v2065
      %v2098 = vadd.f32 %v2030, %v2066
      %v2099 = vadd.f32 %v2031, %v2067
      %v2100 = vadd.f32 %v2032, %v2068
      %v2101 = vadd.f32 %v2033, %v2069
      %v2102 = vadd.f32 %v2034, %v2070
      %v2103 = vadd.f32 %v2035, %v2071
      %v2104 = vadd.f32 %v2036, %v2072
      %v2105 = vadd.f32 %v2037, %v2073
      %v2106 = vadd.f32 %v2038, %v2074
      %v2107 = vadd.f32 %v2039, %v2075
      %v2108 = vadd.f32 %v2040, %v2076
      %v2109 = vadd.f32 %v2041, %v2077
      %v2110 = vadd.f32 %v2042, %v2078
      %v2111 = vadd.f32 %v2043, %v2079
      %v2112 = vadd.f32 %v2044, %v2080
      %v2113 = vadd.f32 %v2045, %v2081
      %v2114 = vadd.f32 %v2046, %v2082
      %v2115 = vadd.f32 %v2047, %v2083
      %v2116 = vadd.f32 %v2048, %v2084
      %v2117 = vadd.f32 %v2049, %v2085
      %v2118 = vadd.f32 %v2050, %v2086
      %v2119 = vadd.f32 %v2051, %v2087
      %v2120 = vadd.f32 %v2052, %v2088
      %v2121 = vadd.f32 %v2053, %v2089
      %v2122 = vadd.f32 %v2054, %v2090
      %v2123 = vadd.f32 %v2055, %v2091
      %v2124 = vadd.f32 %v2056, %v2092
      %v2125 = vadd.f32 %v2057, %v2093
      %v2126 = vadd.f32 %v2058, %v2094
      %v2127 = vadd.f32 %v2059, %v2095
      %v2128 = vadd.f32 %v2060, %v2096
      %v2129 = vadd.f32 %v2061, %v2097
      %v2130 = vld [vmem:[#allocation2 + $0x119] sm:$0xff]
      %v2131 = vld [vmem:[#allocation2 + $0x121] sm:$0xff]
      %v2132 = vsel %vm1304, %v1568, 0.0
      %v2133 = vsel %vm1305, %v1569, 0.0
      %v2134 = vsel %vm1306, %v1570, 0.0
      %v2135 = vsel %vm1307, %v1571, 0.0
      %v2136 = vsel %vm1308, %v1572, 0.0
      %v2137 = vsel %vm1309, %v1573, 0.0
      %v2138 = vsel %vm1310, %v1574, 0.0
      %v2139 = vsel %vm1311, %v1575, 0.0
      %v2140 = vsel %vm1312, %v1576, 0.0
      %v2141 = vsel %vm1313, %v1577, 0.0
      %v2142 = vsel %vm1314, %v1578, 0.0
      %v2143 = vsel %vm1315, %v1579, 0.0
      %v2144 = vsel %vm1316, %v1580, 0.0
      %v2145 = vsel %vm1317, %v1581, 0.0
      %v2146 = vsel %vm1318, %v1582, 0.0
      %v2147 = vsel %vm1319, %v1583, 0.0
      %v2148 = vsel %vm1320, %v1584, 0.0
      %v2149 = vsel %vm1321, %v1585, 0.0
      %v2150 = vsel %vm1322, %v1586, 0.0
      %v2151 = vsel %vm1323, %v1587, 0.0
      %v2152 = vsel %vm1324, %v1588, 0.0
      %v2153 = vsel %vm1325, %v1589, 0.0
      %v2154 = vsel %vm1326, %v1590, 0.0
      %v2155 = vsel %vm1327, %v1591, 0.0
      %v2156 = vsel %vm1328, %v1592, 0.0
      %v2157 = vsel %vm1329, %v1593, 0.0
      %v2158 = vsel %vm1330, %v1594, 0.0
      %v2159 = vsel %vm1331, %v1595, 0.0
      %v2160 = vsel %vm1332, %v1862, 0.0
      %v2161 = vsel %vm1333, %v1863, 0.0
      %v2162 = vsel %vm1334, %v2130, 0.0
      %v2163 = vsel %vm1335, %v2131, 0.0
      %v2164 = vld [vmem:[%s4 + $0x8] sm:$0x1]
      %v2165 = vperm.slane %v2164, 0
      %v2166 = vmul.f32 %v2132, %v2165
      %v2167 = vmul.f32 %v2133, %v2165
      %v2168 = vmul.f32 %v2134, %v2165
      %v2169 = vmul.f32 %v2135, %v2165
      %v2170 = vmul.f32 %v2136, %v2165
      %v2171 = vmul.f32 %v2137, %v2165
      %v2172 = vmul.f32 %v2138, %v2165
      %v2173 = vmul.f32 %v2139, %v2165
      %v2174 = vmul.f32 %v2140, %v2165
      %v2175 = vmul.f32 %v2141, %v2165
      %v2176 = vmul.f32 %v2142, %v2165
      %v2177 = vmul.f32 %v2143, %v2165
      %v2178 = vmul.f32 %v2144, %v2165
      %v2179 = vmul.f32 %v2145, %v2165
      %v2180 = vmul.f32 %v2146, %v2165
      %v2181 = vmul.f32 %v2147, %v2165
      %v2182 = vmul.f32 %v2148, %v2165
      %v2183 = vmul.f32 %v2149, %v2165
      %v2184 = vmul.f32 %v2150, %v2165
      %v2185 = vmul.f32 %v2151, %v2165
      %v2186 = vmul.f32 %v2152, %v2165
      %v2187 = vmul.f32 %v2153, %v2165
      %v2188 = vmul.f32 %v2154, %v2165
      %v2189 = vmul.f32 %v2155, %v2165
      %v2190 = vmul.f32 %v2156, %v2165
      %v2191 = vmul.f32 %v2157, %v2165
      %v2192 = vmul.f32 %v2158, %v2165
      %v2193 = vmul.f32 %v2159, %v2165
      %v2194 = vmul.f32 %v2160, %v2165
      %v2195 = vmul.f32 %v2161, %v2165
      %v2196 = vmul.f32 %v2162, %v2165
      %v2197 = vmul.f32 %v2163, %v2165
      %v2198 = vadd.f32 %v2098, %v2166
      %v2199 = vadd.f32 %v2099, %v2167
      %v2200 = vadd.f32 %v2100, %v2168
      %v2201 = vadd.f32 %v2101, %v2169
      %v2202 = vadd.f32 %v2102, %v2170
      %v2203 = vadd.f32 %v2103, %v2171
      %v2204 = vadd.f32 %v2104, %v2172
      %v2205 = vadd.f32 %v2105, %v2173
      %v2206 = vadd.f32 %v2106, %v2174
      %v2207 = vadd.f32 %v2107, %v2175
      %v2208 = vadd.f32 %v2108, %v2176
      %v2209 = vadd.f32 %v2109, %v2177
      %v2210 = vadd.f32 %v2110, %v2178
      %v2211 = vadd.f32 %v2111, %v2179
      %v2212 = vadd.f32 %v2112, %v2180
      %v2213 = vadd.f32 %v2113, %v2181
      %v2214 = vadd.f32 %v2114, %v2182
      %v2215 = vadd.f32 %v2115, %v2183
      %v2216 = vadd.f32 %v2116, %v2184
      %v2217 = vadd.f32 %v2117, %v2185
      %v2218 = vadd.f32 %v2118, %v2186
      %v2219 = vadd.f32 %v2119, %v2187
      %v2220 = vadd.f32 %v2120, %v2188
      %v2221 = vadd.f32 %v2121, %v2189
      %v2222 = vadd.f32 %v2122, %v2190
      %v2223 = vadd.f32 %v2123, %v2191
      %v2224 = vadd.f32 %v2124, %v2192
      %v2225 = vadd.f32 %v2125, %v2193
      %v2226 = vadd.f32 %v2126, %v2194
      %v2227 = vadd.f32 %v2127, %v2195
      %v2228 = vadd.f32 %v2128, %v2196
      %v2229 = vadd.f32 %v2129, %v2197
      %v2230 = vld [vmem:[%s5] sm:$0x1]
      %v2232 = vperm.slane %v2230, 0
      %v2234 = vmul.f32 %v2198, %v2232
      %v2235 = vmul.f32 %v2199, %v2232
      %v2236 = vmul.f32 %v2200, %v2232
      %v2237 = vmul.f32 %v2201, %v2232
      %v2238 = vmul.f32 %v2202, %v2232
      %v2239 = vmul.f32 %v2203, %v2232
      %v2240 = vmul.f32 %v2204, %v2232
      %v2241 = vmul.f32 %v2205, %v2232
      %v2242 = vmul.f32 %v2206, %v2232
      %v2243 = vmul.f32 %v2207, %v2232
      %v2244 = vmul.f32 %v2208, %v2232
      %v2245 = vmul.f32 %v2209, %v2232
      %v2246 = vmul.f32 %v2210, %v2232
      %v2247 = vmul.f32 %v2211, %v2232
      %v2248 = vmul.f32 %v2212, %v2232
      %v2249 = vmul.f32 %v2213, %v2232
      %v2250 = vmul.f32 %v2214, %v2232
      %v2251 = vmul.f32 %v2215, %v2232
      %v2252 = vmul.f32 %v2216, %v2232
      %v2253 = vmul.f32 %v2217, %v2232
      %v2254 = vmul.f32 %v2218, %v2232
      %v2255 = vmul.f32 %v2219, %v2232
      %v2256 = vmul.f32 %v2220, %v2232
      %v2257 = vmul.f32 %v2221, %v2232
      %v2258 = vmul.f32 %v2222, %v2232
      %v2259 = vmul.f32 %v2223, %v2232
      %v2260 = vmul.f32 %v2224, %v2232
      %v2261 = vmul.f32 %v2225, %v2232
      %v2262 = vmul.f32 %v2226, %v2232
      %v2263 = vmul.f32 %v2227, %v2232
      %v2264 = vmul.f32 %v2228, %v2232
      %v2265 = vmul.f32 %v2229, %v2232
      %v2266 = vld [vmem:[%s6] sm:$0x1]
      %v2268 = vperm.slane %v2266, 0
      %v2270 = vadd.f32 %v2234, %v2268
      %v2271 = vadd.f32 %v2235, %v2268
      %v2272 = vadd.f32 %v2236, %v2268
      %v2273 = vadd.f32 %v2237, %v2268
      %v2274 = vadd.f32 %v2238, %v2268
      %v2275 = vadd.f32 %v2239, %v2268
      %v2276 = vadd.f32 %v2240, %v2268
      %v2277 = vadd.f32 %v2241, %v2268
      %v2278 = vadd.f32 %v2242, %v2268
      %v2279 = vadd.f32 %v2243, %v2268
      %v2280 = vadd.f32 %v2244, %v2268
      %v2281 = vadd.f32 %v2245, %v2268
      %v2282 = vadd.f32 %v2246, %v2268
      %v2283 = vadd.f32 %v2247, %v2268
      %v2284 = vadd.f32 %v2248, %v2268
      %v2285 = vadd.f32 %v2249, %v2268
      %v2286 = vadd.f32 %v2250, %v2268
      %v2287 = vadd.f32 %v2251, %v2268
      %v2288 = vadd.f32 %v2252, %v2268
      %v2289 = vadd.f32 %v2253, %v2268
      %v2290 = vadd.f32 %v2254, %v2268
      %v2291 = vadd.f32 %v2255, %v2268
      %v2292 = vadd.f32 %v2256, %v2268
      %v2293 = vadd.f32 %v2257, %v2268
      %v2294 = vadd.f32 %v2258, %v2268
      %v2295 = vadd.f32 %v2259, %v2268
      %v2296 = vadd.f32 %v2260, %v2268
      %v2297 = vadd.f32 %v2261, %v2268
      %v2298 = vadd.f32 %v2262, %v2268
      %v2299 = vadd.f32 %v2263, %v2268
      %v2300 = vadd.f32 %v2264, %v2268
      %v2301 = vadd.f32 %v2265, %v2268
      %vm2302 = vcmp.ge.f32.partialorder %v2270, 0.0
      %vm2303 = vcmp.ge.f32.partialorder %v2271, 0.0
      %vm2304 = vcmp.ge.f32.partialorder %v2272, 0.0
      %vm2305 = vcmp.ge.f32.partialorder %v2273, 0.0
      %vm2306 = vcmp.ge.f32.partialorder %v2274, 0.0
      %vm2307 = vcmp.ge.f32.partialorder %v2275, 0.0
      %vm2308 = vcmp.ge.f32.partialorder %v2276, 0.0
      %vm2309 = vcmp.ge.f32.partialorder %v2277, 0.0
      %vm2310 = vcmp.ge.f32.partialorder %v2278, 0.0
      %vm2311 = vcmp.ge.f32.partialorder %v2279, 0.0
      %vm2312 = vcmp.ge.f32.partialorder %v2280, 0.0
      %vm2313 = vcmp.ge.f32.partialorder %v2281, 0.0
      %vm2314 = vcmp.ge.f32.partialorder %v2282, 0.0
      %vm2315 = vcmp.ge.f32.partialorder %v2283, 0.0
      %vm2316 = vcmp.ge.f32.partialorder %v2284, 0.0
      %vm2317 = vcmp.ge.f32.partialorder %v2285, 0.0
      %vm2318 = vcmp.ge.f32.partialorder %v2286, 0.0
      %vm2319 = vcmp.ge.f32.partialorder %v2287, 0.0
      %vm2320 = vcmp.ge.f32.partialorder %v2288, 0.0
      %vm2321 = vcmp.ge.f32.partialorder %v2289, 0.0
      %vm2322 = vcmp.ge.f32.partialorder %v2290, 0.0
      %vm2323 = vcmp.ge.f32.partialorder %v2291, 0.0
      %vm2324 = vcmp.ge.f32.partialorder %v2292, 0.0
      %vm2325 = vcmp.ge.f32.partialorder %v2293, 0.0
      %vm2326 = vcmp.ge.f32.partialorder %v2294, 0.0
      %vm2327 = vcmp.ge.f32.partialorder %v2295, 0.0
      %vm2328 = vcmp.ge.f32.partialorder %v2296, 0.0
      %vm2329 = vcmp.ge.f32.partialorder %v2297, 0.0
      %vm2330 = vcmp.ge.f32.partialorder %v2298, 0.0
      %vm2331 = vcmp.ge.f32.partialorder %v2299, 0.0
      %vm2332 = vcmp.ge.f32.partialorder %v2300, 0.0
      %vm2333 = vcmp.ge.f32.partialorder %v2301, 0.0
      %v2334 = vmul.f32 %v2270, 0.25
      %v2335 = vmul.f32 %v2271, 0.25
      %v2336 = vmul.f32 %v2272, 0.25
      %v2337 = vmul.f32 %v2273, 0.25
      %v2338 = vmul.f32 %v2274, 0.25
      %v2339 = vmul.f32 %v2275, 0.25
      %v2340 = vmul.f32 %v2276, 0.25
      %v2341 = vmul.f32 %v2277, 0.25
      %v2342 = vmul.f32 %v2278, 0.25
      %v2343 = vmul.f32 %v2279, 0.25
      %v2344 = vmul.f32 %v2280, 0.25
      %v2345 = vmul.f32 %v2281, 0.25
      %v2346 = vmul.f32 %v2282, 0.25
      %v2347 = vmul.f32 %v2283, 0.25
      %v2348 = vmul.f32 %v2284, 0.25
      %v2349 = vmul.f32 %v2285, 0.25
      %v2350 = vmul.f32 %v2286, 0.25
      %v2351 = vmul.f32 %v2287, 0.25
      %v2352 = vmul.f32 %v2288, 0.25
      %v2353 = vmul.f32 %v2289, 0.25
      %v2354 = vmul.f32 %v2290, 0.25
      %v2355 = vmul.f32 %v2291, 0.25
      %v2356 = vmul.f32 %v2292, 0.25
      %v2357 = vmul.f32 %v2293, 0.25
      %v2358 = vmul.f32 %v2294, 0.25
      %v2359 = vmul.f32 %v2295, 0.25
      %v2360 = vmul.f32 %v2296, 0.25
      %v2361 = vmul.f32 %v2297, 0.25
      %v2362 = vmul.f32 %v2298, 0.25
      %v2363 = vmul.f32 %v2299, 0.25
      %v2364 = vmul.f32 %v2300, 0.25
      %v2365 = vmul.f32 %v2301, 0.25
      %v2366 = vsel %vm2302, %v2270, %v2334
      %v2367 = vsel %vm2303, %v2271, %v2335
      %v2368 = vsel %vm2304, %v2272, %v2336
      %v2369 = vsel %vm2305, %v2273, %v2337
      %v2370 = vsel %vm2306, %v2274, %v2338
      %v2371 = vsel %vm2307, %v2275, %v2339
      %v2372 = vsel %vm2308, %v2276, %v2340
      %v2373 = vsel %vm2309, %v2277, %v2341
      %v2374 = vsel %vm2310, %v2278, %v2342
      %v2375 = vsel %vm2311, %v2279, %v2343
      %v2376 = vsel %vm2312, %v2280, %v2344
      %v2377 = vsel %vm2313, %v2281, %v2345
      %v2378 = vsel %vm2314, %v2282, %v2346
      %v2379 = vsel %vm2315, %v2283, %v2347
      %v2380 = vsel %vm2316, %v2284, %v2348
      %v2381 = vsel %vm2317, %v2285, %v2349
      %v2382 = vsel %vm2318, %v2286, %v2350
      %v2383 = vsel %vm2319, %v2287, %v2351
      %v2384 = vsel %vm2320, %v2288, %v2352
      %v2385 = vsel %vm2321, %v2289, %v2353
      %v2386 = vsel %vm2322, %v2290, %v2354
      %v2387 = vsel %vm2323, %v2291, %v2355
      %v2388 = vsel %vm2324, %v2292, %v2356
      %v2389 = vsel %vm2325, %v2293, %v2357
      %v2390 = vsel %vm2326, %v2294, %v2358
      %v2391 = vsel %vm2327, %v2295, %v2359
      %v2392 = vsel %vm2328, %v2296, %v2360
      %v2393 = vsel %vm2329, %v2297, %v2361
      %v2394 = vsel %vm2330, %v2298, %v2362
      %v2395 = vsel %vm2331, %v2299, %v2363
      %v2396 = vsel %vm2332, %v2300, %v2364
      %v2397 = vsel %vm2333, %v2301, %v2365
      %v2398 = vpack.c.bf16 %v2367, %v2366
      %v2399 = vpack.c.bf16 %v2369, %v2368
      %v2400 = vpack.c.bf16 %v2371, %v2370
      %v2401 = vpack.c.bf16 %v2373, %v2372
      %v2402 = vpack.c.bf16 %v2375, %v2374
      %v2403 = vpack.c.bf16 %v2377, %v2376
      %v2404 = vpack.c.bf16 %v2379, %v2378
      %v2405 = vpack.c.bf16 %v2381, %v2380
      %v2406 = vpack.c.bf16 %v2383, %v2382
      %v2407 = vpack.c.bf16 %v2385, %v2384
      %v2408 = vpack.c.bf16 %v2387, %v2386
      %v2409 = vpack.c.bf16 %v2389, %v2388
      %v2410 = vpack.c.bf16 %v2391, %v2390
      %v2411 = vpack.c.bf16 %v2393, %v2392
      %v2412 = vpack.c.bf16 %v2395, %v2394
      %v2413 = vpack.c.bf16 %v2397, %v2396
      %v2414 = vld [vmem:[%s7] sm:$0xf]
      %v2415 = vld [vmem:[%s7 + $0x4] sm:$0xf]
      %v2416 = vld [vmem:[%s7 + $0x8] sm:$0xf]
      %v2417 = vld [vmem:[%s7 + $0xc] sm:$0xf]
      %v2422 = vunpack.c.l.b16 %v2414
      %v2423 = vunpack.c.l.b16 %v2415
      %v2424 = vunpack.c.l.b16 %v2416
      %v2425 = vunpack.c.l.b16 %v2417
      %v2426 = vpack.c.b16 %v2423, %v2422
      %v2427 = vpack.c.b16 %v2425, %v2424
      %v2431 = vsel %vm784, %v2398, 0
      %v2434 = vsel %vm784, %v2399, 0
      %v2437 = vsel %vm784, %v2400, 0
      %v2440 = vsel %vm784, %v2401, 0
      %v2443 = vsel %vm784, %v2402, 0
      %v2446 = vsel %vm784, %v2403, 0
      %v2449 = vsel %vm784, %v2404, 0
      %v2452 = vsel %vm784, %v2405, 0
      %v2455 = vsel %vm784, %v2406, 0
      %v2458 = vsel %vm784, %v2407, 0
      %v2461 = vsel %vm784, %v2408, 0
      %v2464 = vsel %vm784, %v2409, 0
      %v2467 = vsel %vm784, %v2410, 0
      %v2470 = vsel %vm784, %v2411, 0
      %v2473 = vsel %vm784, %v2412, 0
      %v2476 = vsel %vm784, %v2413, 0
      %2478 = vmatpush.bf16.msra.mxu0 0
      %2479 = vmatpush.bf16.msra.mxu0 0
      %2480 = vmatpush.bf16.msra.mxu0 0
      %2481 = vmatpush.bf16.msra.mxu0 0
      %2482 = vmatpush.bf16.msra.mxu0 0
      %2483 = vmatpush.bf16.msra.mxu0 0
      %2484 = vmatpush.bf16.msra.mxu0 %v2427
      %2485 = vmatpush.bf16.msra.mxu0 %v2426
      %2486 = vmatmul.bf16.gmra.mxu0 %v2431
      %v2487 = vpop.f32.mrf.mxu0
      %v2488 = vadd.f32 0.0, %v2487
      %v2489 = vpop.f32.mrf.mxu0
      %v2490 = vadd.f32 0.0, %v2489
      %2491 = vmatmul.bf16.gmra.mxu0 %v2434
      %v2492 = vpop.f32.mrf.mxu0
      %v2493 = vadd.f32 0.0, %v2492
      %v2494 = vpop.f32.mrf.mxu0
      %v2495 = vadd.f32 0.0, %v2494
      %2496 = vmatmul.bf16.gmra.mxu0 %v2437
      %v2497 = vpop.f32.mrf.mxu0
      %v2498 = vadd.f32 0.0, %v2497
      %v2499 = vpop.f32.mrf.mxu0
      %v2500 = vadd.f32 0.0, %v2499
      %2501 = vmatmul.bf16.gmra.mxu0 %v2440
      %v2502 = vpop.f32.mrf.mxu0
      %v2503 = vadd.f32 0.0, %v2502
      %v2504 = vpop.f32.mrf.mxu0
      %v2505 = vadd.f32 0.0, %v2504
      %2506 = vmatmul.bf16.gmra.mxu0 %v2443
      %v2507 = vpop.f32.mrf.mxu0
      %v2508 = vadd.f32 0.0, %v2507
      %v2509 = vpop.f32.mrf.mxu0
      %v2510 = vadd.f32 0.0, %v2509
      %2511 = vmatmul.bf16.gmra.mxu0 %v2446
      %v2512 = vpop.f32.mrf.mxu0
      %v2513 = vadd.f32 0.0, %v2512
      %v2514 = vpop.f32.mrf.mxu0
      %v2515 = vadd.f32 0.0, %v2514
      %2516 = vmatmul.bf16.gmra.mxu0 %v2449
      %v2517 = vpop.f32.mrf.mxu0
      %v2518 = vadd.f32 0.0, %v2517
      %v2519 = vpop.f32.mrf.mxu0
      %v2520 = vadd.f32 0.0, %v2519
      %2521 = vmatmul.bf16.gmra.mxu0 %v2452
      %v2522 = vpop.f32.mrf.mxu0
      %v2523 = vadd.f32 0.0, %v2522
      %v2524 = vpop.f32.mrf.mxu0
      %v2525 = vadd.f32 0.0, %v2524
      %2526 = vmatmul.bf16.gmra.mxu0 %v2455
      %v2527 = vpop.f32.mrf.mxu0
      %v2528 = vadd.f32 0.0, %v2527
      %v2529 = vpop.f32.mrf.mxu0
      %v2530 = vadd.f32 0.0, %v2529
      %2531 = vmatmul.bf16.gmra.mxu0 %v2458
      %v2532 = vpop.f32.mrf.mxu0
      %v2533 = vadd.f32 0.0, %v2532
      %v2534 = vpop.f32.mrf.mxu0
      %v2535 = vadd.f32 0.0, %v2534
      %2536 = vmatmul.bf16.gmra.mxu0 %v2461
      %v2537 = vpop.f32.mrf.mxu0
      %v2538 = vadd.f32 0.0, %v2537
      %v2539 = vpop.f32.mrf.mxu0
      %v2540 = vadd.f32 0.0, %v2539
      %2541 = vmatmul.bf16.gmra.mxu0 %v2464
      %v2542 = vpop.f32.mrf.mxu0
      %v2543 = vadd.f32 0.0, %v2542
      %v2544 = vpop.f32.mrf.mxu0
      %v2545 = vadd.f32 0.0, %v2544
      %2546 = vmatmul.bf16.gmra.mxu0 %v2467
      %v2547 = vpop.f32.mrf.mxu0
      %v2548 = vadd.f32 0.0, %v2547
      %v2549 = vpop.f32.mrf.mxu0
      %v2550 = vadd.f32 0.0, %v2549
      %2551 = vmatmul.bf16.gmra.mxu0 %v2470
      %v2552 = vpop.f32.mrf.mxu0
      %v2553 = vadd.f32 0.0, %v2552
      %v2554 = vpop.f32.mrf.mxu0
      %v2555 = vadd.f32 0.0, %v2554
      %2556 = vmatmul.bf16.gmra.mxu0 %v2473
      %v2557 = vpop.f32.mrf.mxu0
      %v2558 = vadd.f32 0.0, %v2557
      %v2559 = vpop.f32.mrf.mxu0
      %v2560 = vadd.f32 0.0, %v2559
      %2561 = vmatmul.bf16.gmra.mxu0 %v2476
      %v2562 = vpop.f32.mrf.mxu0
      %v2563 = vadd.f32 0.0, %v2562
      %v2564 = vpop.f32.mrf.mxu0
      %v2565 = vadd.f32 0.0, %v2564
      %2566 = vdwg.mxu0
      %v2567 = vld [vmem:[%s8] sm:$0x1]
      %v2569 = vperm.slane %v2567, 0
      %v2571 = vmul.f32 %v2488, %v2569
      %v2572 = vmul.f32 %v2490, %v2569
      %v2573 = vmul.f32 %v2493, %v2569
      %v2574 = vmul.f32 %v2495, %v2569
      %v2575 = vmul.f32 %v2498, %v2569
      %v2576 = vmul.f32 %v2500, %v2569
      %v2577 = vmul.f32 %v2503, %v2569
      %v2578 = vmul.f32 %v2505, %v2569
      %v2579 = vmul.f32 %v2508, %v2569
      %v2580 = vmul.f32 %v2510, %v2569
      %v2581 = vmul.f32 %v2513, %v2569
      %v2582 = vmul.f32 %v2515, %v2569
      %v2583 = vmul.f32 %v2518, %v2569
      %v2584 = vmul.f32 %v2520, %v2569
      %v2585 = vmul.f32 %v2523, %v2569
      %v2586 = vmul.f32 %v2525, %v2569
      %v2587 = vmul.f32 %v2528, %v2569
      %v2588 = vmul.f32 %v2530, %v2569
      %v2589 = vmul.f32 %v2533, %v2569
      %v2590 = vmul.f32 %v2535, %v2569
      %v2591 = vmul.f32 %v2538, %v2569
      %v2592 = vmul.f32 %v2540, %v2569
      %v2593 = vmul.f32 %v2543, %v2569
      %v2594 = vmul.f32 %v2545, %v2569
      %v2595 = vmul.f32 %v2548, %v2569
      %v2596 = vmul.f32 %v2550, %v2569
      %v2597 = vmul.f32 %v2553, %v2569
      %v2598 = vmul.f32 %v2555, %v2569
      %v2599 = vmul.f32 %v2558, %v2569
      %v2600 = vmul.f32 %v2560, %v2569
      %v2601 = vmul.f32 %v2563, %v2569
      %v2602 = vmul.f32 %v2565, %v2569
      %v2603 = vld [vmem:[%s9] sm:$0x1]
      %v2605 = vperm.slane %v2603, 0
      %v2607 = vadd.f32 %v2571, %v2605
      %v2608 = vadd.f32 %v2572, %v2605
      %v2609 = vadd.f32 %v2573, %v2605
      %v2610 = vadd.f32 %v2574, %v2605
      %v2611 = vadd.f32 %v2575, %v2605
      %v2612 = vadd.f32 %v2576, %v2605
      %v2613 = vadd.f32 %v2577, %v2605
      %v2614 = vadd.f32 %v2578, %v2605
      %v2615 = vadd.f32 %v2579, %v2605
      %v2616 = vadd.f32 %v2580, %v2605
      %v2617 = vadd.f32 %v2581, %v2605
      %v2618 = vadd.f32 %v2582, %v2605
      %v2619 = vadd.f32 %v2583, %v2605
      %v2620 = vadd.f32 %v2584, %v2605
      %v2621 = vadd.f32 %v2585, %v2605
      %v2622 = vadd.f32 %v2586, %v2605
      %v2623 = vadd.f32 %v2587, %v2605
      %v2624 = vadd.f32 %v2588, %v2605
      %v2625 = vadd.f32 %v2589, %v2605
      %v2626 = vadd.f32 %v2590, %v2605
      %v2627 = vadd.f32 %v2591, %v2605
      %v2628 = vadd.f32 %v2592, %v2605
      %v2629 = vadd.f32 %v2593, %v2605
      %v2630 = vadd.f32 %v2594, %v2605
      %v2631 = vadd.f32 %v2595, %v2605
      %v2632 = vadd.f32 %v2596, %v2605
      %v2633 = vadd.f32 %v2597, %v2605
      %v2634 = vadd.f32 %v2598, %v2605
      %v2635 = vadd.f32 %v2599, %v2605
      %v2636 = vadd.f32 %v2600, %v2605
      %v2637 = vadd.f32 %v2601, %v2605
      %v2638 = vadd.f32 %v2602, %v2605
      %v2639 = vunpack.c.l.bf16 %v361
      %v2640 = vunpack.c.l.bf16 %v362
      %v2641 = vunpack.c.l.bf16 %v363
      %v2642 = vunpack.c.l.bf16 %v364
      %v2643 = vunpack.c.l.bf16 %v365
      %v2644 = vunpack.c.l.bf16 %v366
      %v2645 = vunpack.c.l.bf16 %v367
      %v2646 = vunpack.c.l.bf16 %v368
      %v2647 = vunpack.c.l.bf16 %v369
      %v2648 = vunpack.c.l.bf16 %v370
      %v2649 = vunpack.c.l.bf16 %v371
      %v2650 = vunpack.c.l.bf16 %v372
      %v2651 = vunpack.c.l.bf16 %v373
      %v2652 = vunpack.c.l.bf16 %v374
      %v2653 = vunpack.c.l.bf16 %v375
      %v2654 = vunpack.c.l.bf16 %v376
      %v2655 = vunpack.c.l.bf16 %v377
      %v2656 = vunpack.c.l.bf16 %v378
      %v2657 = vunpack.c.l.bf16 %v379
      %v2658 = vunpack.c.l.bf16 %v380
      %v2659 = vunpack.c.l.bf16 %v381
      %v2660 = vunpack.c.l.bf16 %v382
      %v2661 = vunpack.c.l.bf16 %v383
      %v2662 = vunpack.c.l.bf16 %v384
      %v2663 = vunpack.c.l.bf16 %v385
      %v2664 = vunpack.c.l.bf16 %v386
      %v2665 = vunpack.c.l.bf16 %v387
      %v2666 = vunpack.c.l.bf16 %v388
      %v2667 = vunpack.c.l.bf16 %v389
      %v2668 = vunpack.c.l.bf16 %v390
      %v2669 = vunpack.c.l.bf16 %v391
      %v2670 = vunpack.c.l.bf16 %v392
      %v2671 = vadd.f32 %v2607, %v2639
      %v2672 = vadd.f32 %v2608, %v2640
      %v2673 = vadd.f32 %v2609, %v2641
      %v2674 = vadd.f32 %v2610, %v2642
      %v2675 = vadd.f32 %v2611, %v2643
      %v2676 = vadd.f32 %v2612, %v2644
      %v2677 = vadd.f32 %v2613, %v2645
      %v2678 = vadd.f32 %v2614, %v2646
      %v2679 = vadd.f32 %v2615, %v2647
      %v2680 = vadd.f32 %v2616, %v2648
      %v2681 = vadd.f32 %v2617, %v2649
      %v2682 = vadd.f32 %v2618, %v2650
      %v2683 = vadd.f32 %v2619, %v2651
      %v2684 = vadd.f32 %v2620, %v2652
      %v2685 = vadd.f32 %v2621, %v2653
      %v2686 = vadd.f32 %v2622, %v2654
      %v2687 = vadd.f32 %v2623, %v2655
      %v2688 = vadd.f32 %v2624, %v2656
      %v2689 = vadd.f32 %v2625, %v2657
      %v2690 = vadd.f32 %v2626, %v2658
      %v2691 = vadd.f32 %v2627, %v2659
      %v2692 = vadd.f32 %v2628, %v2660
      %v2693 = vadd.f32 %v2629, %v2661
      %v2694 = vadd.f32 %v2630, %v2662
      %v2695 = vadd.f32 %v2631, %v2663
      %v2696 = vadd.f32 %v2632, %v2664
      %v2697 = vadd.f32 %v2633, %v2665
      %v2698 = vadd.f32 %v2634, %v2666
      %v2699 = vadd.f32 %v2635, %v2667
      %v2700 = vadd.f32 %v2636, %v2668
      %v2701 = vadd.f32 %v2637, %v2669
      %v2702 = vadd.f32 %v2638, %v2670
      %2703 = vst.msk [vmem:[%s359] sm:$0xff] %vm474, %v2671
      %2704 = vst.msk [vmem:[%s359 + $0x8] sm:$0xff] %vm474, %v2672
      %2705 = vst.msk [vmem:[%s359 + $0x10] sm:$0xff] %vm474, %v2673
      %2706 = vst.msk [vmem:[%s359 + $0x18] sm:$0xff] %vm474, %v2674
      %2707 = vst.msk [vmem:[%s359 + $0x20] sm:$0xff] %vm474, %v2675
      %2708 = vst.msk [vmem:[%s359 + $0x28] sm:$0xff] %vm474, %v2676
      %2709 = vst.msk [vmem:[%s359 + $0x30] sm:$0xff] %vm474, %v2677
      %2710 = vst.msk [vmem:[%s359 + $0x38] sm:$0xff] %vm474, %v2678
      %2711 = vst.msk [vmem:[%s359 + $0x40] sm:$0xff] %vm474, %v2679
      %2712 = vst.msk [vmem:[%s359 + $0x48] sm:$0xff] %vm474, %v2680
      %2713 = vst.msk [vmem:[%s359 + $0x50] sm:$0xff] %vm474, %v2681
      %2714 = vst.msk [vmem:[%s359 + $0x58] sm:$0xff] %vm474, %v2682
      %2715 = vst.msk [vmem:[%s359 + $0x60] sm:$0xff] %vm474, %v2683
      %2716 = vst.msk [vmem:[%s359 + $0x68] sm:$0xff] %vm474, %v2684
      %2717 = vst.msk [vmem:[%s359 + $0x70] sm:$0xff] %vm474, %v2685
      %2718 = vst.msk [vmem:[%s359 + $0x78] sm:$0xff] %vm474, %v2686
      %2719 = vst.msk [vmem:[%s359 + $0x80] sm:$0xff] %vm474, %v2687
      %2720 = vst.msk [vmem:[%s359 + $0x88] sm:$0xff] %vm474, %v2688
      %2721 = vst.msk [vmem:[%s359 + $0x90] sm:$0xff] %vm474, %v2689
      %2722 = vst.msk [vmem:[%s359 + $0x98] sm:$0xff] %vm474, %v2690
      %2723 = vst.msk [vmem:[%s359 + $0xa0] sm:$0xff] %vm474, %v2691
      %2724 = vst.msk [vmem:[%s359 + $0xa8] sm:$0xff] %vm474, %v2692
      %2725 = vst.msk [vmem:[%s359 + $0xb0] sm:$0xff] %vm474, %v2693
      %2726 = vst.msk [vmem:[%s359 + $0xb8] sm:$0xff] %vm474, %v2694
      %2727 = vst.msk [vmem:[%s359 + $0xc0] sm:$0xff] %vm474, %v2695
      %2728 = vst.msk [vmem:[%s359 + $0xc8] sm:$0xff] %vm474, %v2696
      %2729 = vst.msk [vmem:[%s359 + $0xd0] sm:$0xff] %vm474, %v2697
      %2730 = vst.msk [vmem:[%s359 + $0xd8] sm:$0xff] %vm474, %v2698
      %2731 = vst.msk [vmem:[%s359 + $0xe0] sm:$0xff] %vm474, %v2699
      %2732 = vst.msk [vmem:[%s359 + $0xe8] sm:$0xff] %vm474, %v2700
      %2733 = vst.msk [vmem:[%s359 + $0xf0] sm:$0xff] %vm474, %v2701
      %2734 = vst.msk [vmem:[%s359 + $0xf8] sm:$0xff] %vm474, %v2702
      %p2735 = scmp.lt.s32.totalorder %s21, 1
      %s2736 = scalar_select %p2735, %s21, 1
      %s2737 = smul.addr %s2736, 32
      %s2738 = smul.addr %s2737, 8
      %s2739 = scalar_lea.vmem %s10, %s2738
      // Predicated region
      $region61: #{tpu_custom_call.1} parent=59 // pred_check
        %p2740 = pneg %p254
      $region62: #{tpu_custom_call.1} parent=59 // pred_check_branch
        %2742 = sbr.rel (%p2740) target = $region64
      $region63: #{tpu_custom_call.1} parent=59 // pred_region
        _
      $region64: #{tpu_custom_call.1} parent=59 // pred_fallthru
        _
    $region60: #{tpu_custom_call.1} parent=5 // pred_fallthru
      _
    %p2743 = scmp.le.s32.totalorder 2, %s16
    // Predicated region
    $region65: #{tpu_custom_call.1} parent=5 // pred_check
      %p2744 = pneg %p2743
    $region66: #{tpu_custom_call.1} parent=5 // pred_check_branch
      %2746 = sbr.rel (%p2744) target = $region68
    $region67: #{tpu_custom_call.1} parent=5 // pred_region
      %s2747 = ssub.s32 %s16, 2
      // Predicated region
      $region69: #{tpu_custom_call.1} parent=67 // pred_check
        %p2748 = pneg %p260
      $region70: #{tpu_custom_call.1} parent=67 // pred_check_branch
        %2750 = sbr.rel (%p2748) target = $region72
      $region71: #{tpu_custom_call.1} parent=67 // pred_region
        %p2751 = scmp.lt.s32.totalorder %s22, 1
        %s2752 = scalar_select %p2751, %s22, 1
        %s2753 = smul.addr %s2752, 32
        %s2754 = smul.addr %s2753, 8
        %s2755 = scalar_lea.vmem %s10, %s2754
      $region72: #{tpu_custom_call.1} parent=67 // pred_fallthru
        _
    $region68: #{tpu_custom_call.1} parent=5 // pred_fallthru
      _
  $region6: #{tpu_custom_call.1} parent=0 // loop_footer
    %s20 = sadd.s32 1, %s16
  $region7: #{tpu_custom_call.1} parent=0 // loop_footer_branch
    %15 = sbr.rel target = $region3
  $region8: #{tpu_custom_call.1} parent=0 // loop_exit
    _

</llo_original>
